<compile_context>
chip_gen: v5e
topology: v5e:2x2
jax: 0.10.0
libtpu: 0.0.40
codegen_flags: <defaults>
</compile_context>

<pallas_src>
import jax
import jax.numpy as jnp
from jax.experimental import pallas as pl
from jax.experimental.pallas import tpu as pltpu


def ieconv_kernel(
    # per-edge tiles (software-pipelined over the grid)
    e_ref, ew_ref, ni_ref, no_ref,
    # resident inputs (constant index_map -> DMA'd once, stay in VMEM)
    x_ref, bnin_s_ref, bnin_b_ref, w1_ref, b1_ref, tsel_ref,
    kw0_ref, kb0_ref, kw1_ref, kb1_ref, ssel_ref, bnu_t_ref, w2_ref, b2_ref,
    # output (resident block, written at the last grid step)
    out_ref,
    # scratch (persists across grid steps)
    msg_node_ref, acc_ref,
):
    f32 = jnp.float32
    i = pl.program_id(0)
    n_tiles = pl.num_programs(0)
    TE = e_ref.shape[0]
    N, h = msg_node_ref.shape
    hh = h * h

    # ---- grid step 0 (runs once): node-level stage + zero the accumulator --------
    # input_batch_norm (folded affine) + relu (dropout = identity), then linear1 with
    # bn_msg folded in + relu -> per-node message table (N, h).  linear1 / BN commute
    # with the row gather, so this is N rows of MXU work instead of E.
    @pl.when(i == 0)
    def _():
        layer_in = jnp.maximum(x_ref[...] * bnin_s_ref[...] + bnin_b_ref[...], 0.0)
        msg_node_ref[...] = jnp.maximum(
            jnp.dot(layer_in, w1_ref[...], preferred_element_type=f32) + b1_ref[...], 0.0)
        acc_ref[...] = jnp.zeros_like(acc_ref)

    # ---- edge kernel MLP: relu(edge_input @ W0 + b0) @ [W1_mat | W1_bias | pad] ---
    # The last layer is fused into one lane-padded matmul; the bn_upd *scale* is
    # pre-folded into its output columns (shift applied once after aggregation).
    eh = jnp.maximum(
        jnp.dot(e_ref[...], kw0_ref[...], preferred_element_type=f32) + kb0_ref[...], 0.0)
    kflat = jnp.dot(eh, kw1_ref[...], preferred_element_type=f32) + kb1_ref[...]
    kw = kflat[:, :hh]          # kernel[:, 1:, :] flattened as column j*h+k   (TE, h*h)
    kb = kflat[:, hh:hh + h]    # kernel[:, 0, :]                              (TE, h)

    # ---- gather on the MXU: one-hot (TE, N) built in registers (no E x N HBM matrix,
    # no serial per-row loop), then replicate each gathered message h times along lanes.
    gsel = (jax.lax.broadcasted_iota(jnp.int32, (TE, N), 1) == ni_ref[...]).astype(f32)
    gath = jnp.dot(gsel, msg_node_ref[...], preferred_element_type=f32)        # (TE, h)
    rep = jnp.dot(gath, tsel_ref[...], preferred_element_type=f32)             # (TE, h*h)

    # ---- einsum('ijk,ik->ij', kernel[:,1:,:], msg) + kernel[:,0,:] ----------------
    msg2 = jnp.dot(kw * rep, ssel_ref[...], preferred_element_type=f32) + kb   # (TE, h)

    # ---- scatter_add on the MXU: weighted one-hot (N, TE); edge_weight is folded in,
    # so padded edges (weight 0) contribute nothing.  The grid axis is sequential
    # ("arbitrary"), keeping the accumulator race-free.
    sc_sel = jnp.where(
        jax.lax.broadcasted_iota(jnp.int32, (N, TE), 0) == no_ref[...],
        ew_ref[...], 0.0)
    acc_ref[...] += jnp.dot(sc_sel, msg2, preferred_element_type=f32)          # (N, h)

    # ---- last grid step: bn_upd shift + relu (dropout identity), linear2 with bn_out
    # folded in, lane-padded unmasked output store.
    @pl.when(i == n_tiles - 1)
    def _():
        upd = jnp.maximum(acc_ref[...] + bnu_t_ref[...], 0.0)
        out_ref[...] = jnp.dot(upd, w2_ref[...], preferred_element_type=f32) + b2_ref[...]


def _vmem_limit_bytes():
    """Generation-aware scoped-VMEM cap (v5e/v6e: 128 MiB physical, v7x: 64 MiB)."""
    try:
        phys = int(pltpu.get_tpu_info().vmem_capacity_bytes)
    except Exception:
        return 32 * 1024 * 1024          # conservative fallback, safe on all generations
    return int(min(max(phys - 8 * 1024 * 1024, 32 * 1024 * 1024), 100 * 1024 * 1024))


def ieconv_forward(x, edge_input, node_in, node_out, edge_weight, params, *, edge_tile=128):
    """Eval-mode IEConvLayer forward.  edge_tile: 128-256 recommended; must be a multiple
    of 128 so the (1, TE) edge-scalar blocks are lane-aligned."""
    f32 = jnp.float32
    N, input_dim = x.shape
    E, edge_input_dim = edge_input.shape
    h = params["w1"].shape[1]
    output_dim = params["w2"].shape[1]
    eps = 1e-5  # nn.BatchNorm1d default eps

    TE = int(edge_tile)
    assert TE % 128 == 0, "edge_tile must be a multiple of 128"

    def fold_bn(p):
        gamma, beta, mean, var = p
        scale = gamma / jnp.sqrt(var + eps)
        shift = beta - mean * scale
        return scale.astype(f32), shift.astype(f32)

    bnin_s, bnin_t = fold_bn(params["bn_in"])
    bnm_s, bnm_t = fold_bn(params["bn_msg"])
    bnu_s, bnu_t = fold_bn(params["bn_upd"])
    bno_s, bno_t = fold_bn(params["bn_out"])

    # fold bn_msg into linear1
    w1f = params["w1"].astype(f32) * bnm_s[None, :]
    b1f = params["b1"].astype(f32) * bnm_s + bnm_t

    # kernel-MLP last layer: fold the bn_upd *scale* into its output columns, then fuse
    # the matrix block (kernel[:,1:,:] flattened as j*h+k) and the bias block
    # (kernel[:,0,:]) into ONE lane-padded weight matrix -> a single MXU matmul per tile.
    kw1 = params["kw1"].astype(f32)
    kb1 = params["kb1"].astype(f32)
    mat_scale = jnp.repeat(bnu_s, h)                 # column j*h+k scales with channel j
    kw1_mat = kw1[:, h:] * mat_scale[None, :]
    kb1_mat = kb1[h:] * mat_scale
    kw1_bias = kw1[:, :h] * bnu_s[None, :]
    kb1_bias = kb1[:h] * bnu_s
    kh = kw1.shape[0]
    kcols = h * h + h
    kcols_pad = ((kcols + 127) // 128) * 128
    kw1f = jnp.zeros((kh, kcols_pad), f32)
    kw1f = kw1f.at[:, :h * h].set(kw1_mat).at[:, h * h:kcols].set(kw1_bias)
    kb1f = jnp.zeros((kcols_pad,), f32)
    kb1f = kb1f.at[:h * h].set(kb1_mat).at[h * h:kcols].set(kb1_bias)

    # fold bn_out into linear2; pad output channels to a full 128-lane vreg
    out_pad = ((output_dim + 127) // 128) * 128
    w2f = jnp.zeros((h, out_pad), f32).at[:, :output_dim].set(
        params["w2"].astype(f32) * bno_s[None, :])
    b2f = jnp.zeros((out_pad,), f32).at[:output_dim].set(
        params["b2"].astype(f32) * bno_s + bno_t)

    # constant selection matrices: tsel replicates a message h times along lanes,
    # ssel reduces the h*h lanes back to h output channels.
    tsel = jnp.tile(jnp.eye(h, dtype=f32), (1, h))                        # (h, h*h)
    ssel = jnp.kron(jnp.eye(h, dtype=f32), jnp.ones((h, 1), f32))         # (h*h, h)

    # pad the edge dimension to a multiple of TE; padded edges get weight 0 (index 0).
    E_pad = ((E + TE - 1) // TE) * TE
    n_tiles = E_pad // TE

    edge_input_p = jnp.zeros((E_pad, edge_input_dim), f32).at[:E].set(edge_input.astype(f32))
    edge_weight_p = jnp.zeros((1, E_pad), f32).at[0, :E].set(edge_weight.astype(f32))
    node_in_p = jnp.zeros((E_pad, 1), jnp.int32).at[:E, 0].set(node_in.astype(jnp.int32))
    node_out_p = jnp.zeros((1, E_pad), jnp.int32).at[0, :E].set(node_out.astype(jnp.int32))

    row = lambda v: v.reshape(1, -1).astype(f32)

    tensor_args = (
        # per-edge (tiled over the grid)
        edge_input_p, edge_weight_p, node_in_p, node_out_p,
        # resident node features / weights / folded-BN constants
        x.astype(f32), row(bnin_s), row(bnin_t), w1f, row(b1f), tsel,
        params["kw0"].astype(f32), row(params["kb0"]), kw1f, row(kb1f),
        ssel, row(bnu_t), w2f, row(b2f),
    )

    def resident_spec(shape):
        # Constant-index blocks are fetched once and stay resident in VMEM; footprint of
        # the weights/BN rows is tiny here, so default buffering is left untouched.
        return pl.BlockSpec(shape, lambda i: (0,) * len(shape))

    in_specs = [
        pl.BlockSpec((TE, edge_input_dim), lambda i: (i, 0)),   # edge_input tile
        pl.BlockSpec((1, TE), lambda i: (0, i)),                # edge_weight (lane row)
        pl.BlockSpec((TE, 1), lambda i: (i, 0)),                # node_in (sublane col)
        pl.BlockSpec((1, TE), lambda i: (0, i)),                # node_out (lane row)
    ] + [resident_spec(a.shape) for a in tensor_args[4:]]

    grid_spec = pltpu.PrefetchScalarGridSpec(
        num_scalar_prefetch=0,
        grid=(n_tiles,),
        in_specs=in_specs,
        out_specs=pl.BlockSpec((N, out_pad), lambda i: (0, 0)),
        scratch_shapes=[
            pltpu.VMEM((N, h), f32),    # per-node message table (linear1 + bn_msg + relu)
            pltpu.VMEM((N, h), f32),    # aggregation accumulator (segment sum)
        ],
    )

    out = pl.pallas_call(
        ieconv_kernel,
        grid_spec=grid_spec,
        out_shape=jax.ShapeDtypeStruct((N, out_pad), f32),
        compiler_params=pltpu.CompilerParams(
            dimension_semantics=("arbitrary",),   # edge axis feeds the accumulator
            vmem_limit_bytes=_vmem_limit_bytes(),
        ),
    )(*tensor_args)

    return out[:, :output_dim]


def reference(x, edge_input, node_in, node_out, edge_weight, params):
    """Pure-JAX reference mirroring the PyTorch forward (eval mode)."""
    eps = 1e-5
    N = x.shape[0]
    h = params["w1"].shape[1]

    def bn(v, p):
        g, b, m, var = p
        return (v - m) / jnp.sqrt(var + eps) * g + b

    layer_in = jax.nn.relu(bn(x, params["bn_in"]))
    msg = layer_in[node_in] @ params["w1"] + params["b1"]
    msg = jax.nn.relu(bn(msg, params["bn_msg"]))
    eh = jax.nn.relu(edge_input @ params["kw0"] + params["kb0"])
    kflat = eh @ params["kw1"] + params["kb1"]
    kmat = kflat.reshape(-1, h + 1, h)
    msg = jnp.einsum("ijk,ik->ij", kmat[:, 1:, :], msg) + kmat[:, 0, :]
    upd = jax.ops.segment_sum(msg * edge_weight[:, None], node_out, num_segments=N)
    upd = jax.nn.relu(bn(upd, params["bn_upd"]))
    out = upd @ params["w2"] + params["b2"]
    return bn(out, params["bn_out"])


if __name__ == "__main__":
    N, E = 24, 300
    input_dim, hidden_dim, output_dim = 8, 16, 8
    edge_input_dim, kernel_hidden_dim = 8, 32

    keys = iter(jax.random.split(jax.random.PRNGKey(0), 32))
    nrm = lambda shape, s=0.1: jax.random.normal(next(keys), shape, jnp.float32) * s
    uni = lambda shape: jax.random.uniform(next(keys), shape, jnp.float32, minval=0.5, maxval=1.5)

    x = nrm((N, input_dim), 1.0)
    edge_input = nrm((E, edge_input_dim), 1.0)
    node_in = jax.random.randint(next(keys), (E,), 0, N)
    node_out = jax.random.randint(next(keys), (E,), 0, N)
    edge_weight = uni((E,))

    params = dict(
        w1=nrm((input_dim, hidden_dim)), b1=nrm((hidden_dim,)),
        kw0=nrm((edge_input_dim, kernel_hidden_dim)), kb0=nrm((kernel_hidden_dim,)),
        kw1=nrm((kernel_hidden_dim, (hidden_dim + 1) * hidden_dim)),
        kb1=nrm(((hidden_dim + 1) * hidden_dim,)),
        w2=nrm((hidden_dim, output_dim)), b2=nrm((output_dim,)),
        # BatchNorm params: (gamma, beta, running_mean, running_var)
        bn_in=(uni((input_dim,)), nrm((input_dim,)), nrm((input_dim,)), uni((input_dim,))),
        bn_msg=(uni((hidden_dim,)), nrm((hidden_dim,)), nrm((hidden_dim,)), uni((hidden_dim,))),
        bn_upd=(uni((hidden_dim,)), nrm((hidden_dim,)), nrm((hidden_dim,)), uni((hidden_dim,))),
        bn_out=(uni((output_dim,)), nrm((output_dim,)), nrm((output_dim,)), uni((output_dim,))),
    )

    out = ieconv_forward(x, edge_input, node_in, node_out, edge_weight, params, edge_tile=128)
    out = jax.block_until_ready(out)

    ref = reference(x, edge_input, node_in, node_out, edge_weight, params)
    assert out.shape == (N, output_dim)
    max_diff = float(jnp.max(jnp.abs(out - ref)))
    assert jnp.allclose(out, ref, atol=1e-3, rtol=1e-3), (
        "Pallas kernel mismatch vs JAX reference; max abs diff = %g" % max_diff)
    print("KERNEL_OK")
</pallas_src>

<mosaic_0001>
module attributes {stable_mosaic.version = 11 : i64} {
  func.func @ieconv_kernel(%arg0: i32, %arg1: memref<128x8xf32, #tpu.memory_space<vmem>>, %arg2: memref<1x128xf32, #tpu.memory_space<vmem>>, %arg3: memref<128x1xi32, #tpu.memory_space<vmem>>, %arg4: memref<1x128xi32, #tpu.memory_space<vmem>>, %arg5: memref<24x8xf32, #tpu.memory_space<vmem>>, %arg6: memref<1x8xf32, #tpu.memory_space<vmem>>, %arg7: memref<1x8xf32, #tpu.memory_space<vmem>>, %arg8: memref<8x16xf32, #tpu.memory_space<vmem>>, %arg9: memref<1x16xf32, #tpu.memory_space<vmem>>, %arg10: memref<16x256xf32, #tpu.memory_space<vmem>>, %arg11: memref<8x32xf32, #tpu.memory_space<vmem>>, %arg12: memref<1x32xf32, #tpu.memory_space<vmem>>, %arg13: memref<32x384xf32, #tpu.memory_space<vmem>>, %arg14: memref<1x384xf32, #tpu.memory_space<vmem>>, %arg15: memref<256x16xf32, #tpu.memory_space<vmem>>, %arg16: memref<1x16xf32, #tpu.memory_space<vmem>>, %arg17: memref<16x128xf32, #tpu.memory_space<vmem>>, %arg18: memref<1x128xf32, #tpu.memory_space<vmem>>, %arg19: memref<24x128xf32, #tpu.memory_space<vmem>>, %arg20: memref<24x16xf32, #tpu.memory_space<vmem>>, %arg21: memref<24x16xf32, #tpu.memory_space<vmem>>) attributes {dimension_semantics = [#tpu.dimension_semantics<arbitrary>], iteration_bounds = array<i64: 3>, scalar_prefetch = 0 : i64, scratch_operands = 2 : i64, tpu.core_type = #tpu.core_type<tc>, window_params = [{transform_indices = @transform_0, window_bounds = array<i64: 128, 8>}, {transform_indices = @transform_1, window_bounds = array<i64: 1, 128>}, {transform_indices = @transform_2, window_bounds = array<i64: 128, 1>}, {transform_indices = @transform_3, window_bounds = array<i64: 1, 128>}, {pipeline_mode = #tpu.pipeline_mode<synchronous>, transform_indices = @transform_4, window_bounds = array<i64: 24, 8>}, {pipeline_mode = #tpu.pipeline_mode<synchronous>, transform_indices = @transform_5, window_bounds = array<i64: 1, 8>}, {pipeline_mode = #tpu.pipeline_mode<synchronous>, transform_indices = @transform_6, window_bounds = array<i64: 1, 8>}, {pipeline_mode = #tpu.pipeline_mode<synchronous>, transform_indices = @transform_7, window_bounds = array<i64: 8, 16>}, {pipeline_mode = #tpu.pipeline_mode<synchronous>, transform_indices = @transform_8, window_bounds = array<i64: 1, 16>}, {pipeline_mode = #tpu.pipeline_mode<synchronous>, transform_indices = @transform_9, window_bounds = array<i64: 16, 256>}, {pipeline_mode = #tpu.pipeline_mode<synchronous>, transform_indices = @transform_10, window_bounds = array<i64: 8, 32>}, {pipeline_mode = #tpu.pipeline_mode<synchronous>, transform_indices = @transform_11, window_bounds = array<i64: 1, 32>}, {pipeline_mode = #tpu.pipeline_mode<synchronous>, transform_indices = @transform_12, window_bounds = array<i64: 32, 384>}, {pipeline_mode = #tpu.pipeline_mode<synchronous>, transform_indices = @transform_13, window_bounds = array<i64: 1, 384>}, {pipeline_mode = #tpu.pipeline_mode<synchronous>, transform_indices = @transform_14, window_bounds = array<i64: 256, 16>}, {pipeline_mode = #tpu.pipeline_mode<synchronous>, transform_indices = @transform_15, window_bounds = array<i64: 1, 16>}, {pipeline_mode = #tpu.pipeline_mode<synchronous>, transform_indices = @transform_16, window_bounds = array<i64: 16, 128>}, {pipeline_mode = #tpu.pipeline_mode<synchronous>, transform_indices = @transform_17, window_bounds = array<i64: 1, 128>}, {pipeline_mode = #tpu.pipeline_mode<synchronous>, transform_indices = @transform_18, window_bounds = array<i64: 24, 128>}]} {
    %c0_i32 = arith.constant 0 : i32
    %0 = arith.cmpi eq, %arg0, %c0_i32 : i32
    %1 = arith.extui %0 : i1 to i32
    %c0_i32_0 = arith.constant 0 : i32
    %2 = arith.cmpi ne, %1, %c0_i32_0 : i32
    scf.if %2 {
      %c0_34 = arith.constant 0 : index
      %c0_35 = arith.constant 0 : index
      %48 = vector.load %arg5[%c0_34, %c0_35] : memref<24x8xf32, #tpu.memory_space<vmem>>, vector<24x8xf32>
      %c0_36 = arith.constant 0 : index
      %c0_37 = arith.constant 0 : index
      %49 = vector.load %arg6[%c0_36, %c0_37] : memref<1x8xf32, #tpu.memory_space<vmem>>, vector<1x8xf32>
      %50 = vector.broadcast %49 : vector<1x8xf32> to vector<24x8xf32>
      %51 = arith.mulf %48, %50 : vector<24x8xf32>
      %c0_38 = arith.constant 0 : index
      %c0_39 = arith.constant 0 : index
      %52 = vector.load %arg7[%c0_38, %c0_39] : memref<1x8xf32, #tpu.memory_space<vmem>>, vector<1x8xf32>
      %53 = vector.broadcast %52 : vector<1x8xf32> to vector<24x8xf32>
      %54 = arith.addf %51, %53 : vector<24x8xf32>
      %cst_40 = arith.constant 0.000000e+00 : f32
      %55 = vector.broadcast %cst_40 : f32 to vector<24x8xf32>
      %56 = arith.maximumf %54, %55 : vector<24x8xf32>
      %c0_41 = arith.constant 0 : index
      %c0_42 = arith.constant 0 : index
      %57 = vector.load %arg8[%c0_41, %c0_42] : memref<8x16xf32, #tpu.memory_space<vmem>>, vector<8x16xf32>
      %cst_43 = arith.constant dense<0.000000e+00> : vector<24x16xf32>
      %58 = tpu.matmul %56, %57, %cst_43 {dimension_numbers = #tpu.dot_dimension_numbers<[1], [0], [0], [1], [0, 0, 1, 1], [], []>} : vector<24x8xf32>, vector<8x16xf32>, vector<24x16xf32> -> vector<24x16xf32>
      %c0_44 = arith.constant 0 : index
      %c0_45 = arith.constant 0 : index
      %59 = vector.load %arg9[%c0_44, %c0_45] : memref<1x16xf32, #tpu.memory_space<vmem>>, vector<1x16xf32>
      %60 = vector.broadcast %59 : vector<1x16xf32> to vector<24x16xf32>
      %61 = arith.addf %58, %60 : vector<24x16xf32>
      %cst_46 = arith.constant 0.000000e+00 : f32
      %62 = vector.broadcast %cst_46 : f32 to vector<24x16xf32>
      %63 = arith.maximumf %61, %62 : vector<24x16xf32>
      %c0_47 = arith.constant 0 : index
      %c0_48 = arith.constant 0 : index
      %64 = vector.load %arg20[%c0_47, %c0_48] : memref<24x16xf32, #tpu.memory_space<vmem>>, vector<24x16xf32>
      tpu.vector_store %arg20[%c0_47, %c0_48], %63 {strides = array<i32>} : memref<24x16xf32, #tpu.memory_space<vmem>>, vector<24x16xf32>,
      %cst_49 = arith.constant 0.000000e+00 : f32
      %65 = vector.broadcast %cst_49 : f32 to vector<24x16xf32>
      %c0_50 = arith.constant 0 : index
      %c0_51 = arith.constant 0 : index
      %66 = vector.load %arg21[%c0_50, %c0_51] : memref<24x16xf32, #tpu.memory_space<vmem>>, vector<24x16xf32>
      tpu.vector_store %arg21[%c0_50, %c0_51], %65 {strides = array<i32>} : memref<24x16xf32, #tpu.memory_space<vmem>>, vector<24x16xf32>,
    } else {
    }
    %c0 = arith.constant 0 : index
    %c0_1 = arith.constant 0 : index
    %3 = vector.load %arg1[%c0, %c0_1] : memref<128x8xf32, #tpu.memory_space<vmem>>, vector<128x8xf32>
    %c0_2 = arith.constant 0 : index
    %c0_3 = arith.constant 0 : index
    %4 = vector.load %arg11[%c0_2, %c0_3] : memref<8x32xf32, #tpu.memory_space<vmem>>, vector<8x32xf32>
    %cst = arith.constant dense<0.000000e+00> : vector<128x32xf32>
    %5 = tpu.matmul %3, %4, %cst {dimension_numbers = #tpu.dot_dimension_numbers<[1], [0], [0], [1], [0, 0, 1, 1], [], []>} : vector<128x8xf32>, vector<8x32xf32>, vector<128x32xf32> -> vector<128x32xf32>
    %c0_4 = arith.constant 0 : index
    %c0_5 = arith.constant 0 : index
    %6 = vector.load %arg12[%c0_4, %c0_5] : memref<1x32xf32, #tpu.memory_space<vmem>>, vector<1x32xf32>
    %7 = vector.broadcast %6 : vector<1x32xf32> to vector<128x32xf32>
    %8 = arith.addf %5, %7 : vector<128x32xf32>
    %cst_6 = arith.constant 0.000000e+00 : f32
    %9 = vector.broadcast %cst_6 : f32 to vector<128x32xf32>
    %10 = arith.maximumf %8, %9 : vector<128x32xf32>
    %c0_7 = arith.constant 0 : index
    %c0_8 = arith.constant 0 : index
    %11 = vector.load %arg13[%c0_7, %c0_8] : memref<32x384xf32, #tpu.memory_space<vmem>>, vector<32x384xf32>
    %cst_9 = arith.constant dense<0.000000e+00> : vector<128x384xf32>
    %12 = tpu.matmul %10, %11, %cst_9 {dimension_numbers = #tpu.dot_dimension_numbers<[1], [0], [0], [1], [0, 0, 1, 1], [], []>} : vector<128x32xf32>, vector<32x384xf32>, vector<128x384xf32> -> vector<128x384xf32>
    %c0_10 = arith.constant 0 : index
    %c0_11 = arith.constant 0 : index
    %13 = vector.load %arg14[%c0_10, %c0_11] : memref<1x384xf32, #tpu.memory_space<vmem>>, vector<1x384xf32>
    %14 = vector.broadcast %13 : vector<1x384xf32> to vector<128x384xf32>
    %15 = arith.addf %12, %14 : vector<128x384xf32>
    %16 = vector.extract_strided_slice %15 {offsets = [0, 0], sizes = [128, 256], strides = [1, 1]} : vector<128x384xf32> to vector<128x256xf32>
    %17 = vector.extract_strided_slice %15 {offsets = [0, 256], sizes = [128, 16], strides = [1, 1]} : vector<128x384xf32> to vector<128x16xf32>
    %18 = tpu.iota {dimensions = array<i32: 1>} : vector<128x24xi32>
    %c0_12 = arith.constant 0 : index
    %c0_13 = arith.constant 0 : index
    %19 = vector.load %arg3[%c0_12, %c0_13] : memref<128x1xi32, #tpu.memory_space<vmem>>, vector<128x1xi32>
    %20 = vector.broadcast %19 : vector<128x1xi32> to vector<128x24xi32>
    %21 = arith.cmpi eq, %18, %20 : vector<128x24xi32>
    %22 = arith.extui %21 : vector<128x24xi1> to vector<128x24xi32>
    %23 = arith.sitofp %22 : vector<128x24xi32> to vector<128x24xf32>
    %c0_14 = arith.constant 0 : index
    %c0_15 = arith.constant 0 : index
    %24 = vector.load %arg20[%c0_14, %c0_15] : memref<24x16xf32, #tpu.memory_space<vmem>>, vector<24x16xf32>
    %cst_16 = arith.constant dense<0.000000e+00> : vector<128x16xf32>
    %25 = tpu.matmul %23, %24, %cst_16 {dimension_numbers = #tpu.dot_dimension_numbers<[1], [0], [0], [1], [0, 0, 1, 1], [], []>} : vector<128x24xf32>, vector<24x16xf32>, vector<128x16xf32> -> vector<128x16xf32>
    %c0_17 = arith.constant 0 : index
    %c0_18 = arith.constant 0 : index
    %26 = vector.load %arg10[%c0_17, %c0_18] : memref<16x256xf32, #tpu.memory_space<vmem>>, vector<16x256xf32>
    %cst_19 = arith.constant dense<0.000000e+00> : vector<128x256xf32>
    %27 = tpu.matmul %25, %26, %cst_19 {dimension_numbers = #tpu.dot_dimension_numbers<[1], [0], [0], [1], [0, 0, 1, 1], [], []>} : vector<128x16xf32>, vector<16x256xf32>, vector<128x256xf32> -> vector<128x256xf32>
    %28 = arith.mulf %16, %27 : vector<128x256xf32>
    %c0_20 = arith.constant 0 : index
    %c0_21 = arith.constant 0 : index
    %29 = vector.load %arg15[%c0_20, %c0_21] : memref<256x16xf32, #tpu.memory_space<vmem>>, vector<256x16xf32>
    %cst_22 = arith.constant dense<0.000000e+00> : vector<128x16xf32>
    %30 = tpu.matmul %28, %29, %cst_22 {dimension_numbers = #tpu.dot_dimension_numbers<[1], [0], [0], [1], [0, 0, 1, 1], [], []>} : vector<128x256xf32>, vector<256x16xf32>, vector<128x16xf32> -> vector<128x16xf32>
    %31 = arith.addf %30, %17 : vector<128x16xf32>
    %32 = tpu.iota {dimensions = array<i32: 0>} : vector<24x128xi32>
    %c0_23 = arith.constant 0 : index
    %c0_24 = arith.constant 0 : index
    %33 = vector.load %arg4[%c0_23, %c0_24] : memref<1x128xi32, #tpu.memory_space<vmem>>, vector<1x128xi32>
    %34 = vector.broadcast %33 : vector<1x128xi32> to vector<24x128xi32>
    %35 = arith.cmpi eq, %32, %34 : vector<24x128xi32>
    %c0_25 = arith.constant 0 : index
    %c0_26 = arith.constant 0 : index
    %36 = vector.load %arg2[%c0_25, %c0_26] : memref<1x128xf32, #tpu.memory_space<vmem>>, vector<1x128xf32>
    %cst_27 = arith.constant 0.000000e+00 : f32
    %37 = vector.shape_cast %36 : vector<1x128xf32> to vector<1x128xf32>
    %38 = vector.broadcast %37 : vector<1x128xf32> to vector<24x128xf32>
    %39 = vector.broadcast %cst_27 : f32 to vector<24x128xf32>
    %40 = arith.select %35, %38, %39 : vector<24x128xi1>, vector<24x128xf32>
    %c0_28 = arith.constant 0 : index
    %c0_29 = arith.constant 0 : index
    %41 = vector.load %arg21[%c0_28, %c0_29] : memref<24x16xf32, #tpu.memory_space<vmem>>, vector<24x16xf32>
    %cst_30 = arith.constant dense<0.000000e+00> : vector<24x16xf32>
    %42 = tpu.matmul %40, %31, %cst_30 {dimension_numbers = #tpu.dot_dimension_numbers<[1], [0], [0], [1], [0, 0, 1, 1], [], []>} : vector<24x128xf32>, vector<128x16xf32>, vector<24x16xf32> -> vector<24x16xf32>
    %43 = arith.addf %41, %42 : vector<24x16xf32>
    %c0_31 = arith.constant 0 : index
    %c0_32 = arith.constant 0 : index
    %44 = vector.load %arg21[%c0_31, %c0_32] : memref<24x16xf32, #tpu.memory_space<vmem>>, vector<24x16xf32>
    tpu.vector_store %arg21[%c0_31, %c0_32], %43 {strides = array<i32>} : memref<24x16xf32, #tpu.memory_space<vmem>>, vector<24x16xf32>,
    %c2_i32 = arith.constant 2 : i32
    %45 = arith.cmpi eq, %arg0, %c2_i32 : i32
    %46 = arith.extui %45 : i1 to i32
    %c0_i32_33 = arith.constant 0 : i32
    %47 = arith.cmpi ne, %46, %c0_i32_33 : i32
    scf.if %47 {
      %c0_34 = arith.constant 0 : index
      %c0_35 = arith.constant 0 : index
      %48 = vector.load %arg21[%c0_34, %c0_35] : memref<24x16xf32, #tpu.memory_space<vmem>>, vector<24x16xf32>
      %c0_36 = arith.constant 0 : index
      %c0_37 = arith.constant 0 : index
      %49 = vector.load %arg16[%c0_36, %c0_37] : memref<1x16xf32, #tpu.memory_space<vmem>>, vector<1x16xf32>
      %50 = vector.broadcast %49 : vector<1x16xf32> to vector<24x16xf32>
      %51 = arith.addf %48, %50 : vector<24x16xf32>
      %cst_38 = arith.constant 0.000000e+00 : f32
      %52 = vector.broadcast %cst_38 : f32 to vector<24x16xf32>
      %53 = arith.maximumf %51, %52 : vector<24x16xf32>
      %c0_39 = arith.constant 0 : index
      %c0_40 = arith.constant 0 : index
      %54 = vector.load %arg17[%c0_39, %c0_40] : memref<16x128xf32, #tpu.memory_space<vmem>>, vector<16x128xf32>
      %cst_41 = arith.constant dense<0.000000e+00> : vector<24x128xf32>
      %55 = tpu.matmul %53, %54, %cst_41 {dimension_numbers = #tpu.dot_dimension_numbers<[1], [0], [0], [1], [0, 0, 1, 1], [], []>} : vector<24x16xf32>, vector<16x128xf32>, vector<24x128xf32> -> vector<24x128xf32>
      %c0_42 = arith.constant 0 : index
      %c0_43 = arith.constant 0 : index
      %56 = vector.load %arg18[%c0_42, %c0_43] : memref<1x128xf32, #tpu.memory_space<vmem>>, vector<1x128xf32>
      %57 = vector.broadcast %56 : vector<1x128xf32> to vector<24x128xf32>
      %58 = arith.addf %55, %57 : vector<24x128xf32>
      %c0_44 = arith.constant 0 : index
      %c0_45 = arith.constant 0 : index
      %59 = vector.load %arg19[%c0_44, %c0_45] : memref<24x128xf32, #tpu.memory_space<vmem>>, vector<24x128xf32>
      tpu.vector_store %arg19[%c0_44, %c0_45], %58 {strides = array<i32>} : memref<24x128xf32, #tpu.memory_space<vmem>>, vector<24x128xf32>,
    } else {
    }
    return
  }
  func.func @transform_0(%arg0: i32) -> (i32, i32) {
    %c0_i32 = arith.constant 0 : i32
    %c0_i32_0 = arith.constant 0 : i32
    return %arg0, %c0_i32 : i32, i32
  }
  func.func @transform_1(%arg0: i32) -> (i32, i32) {
    %c0_i32 = arith.constant 0 : i32
    %c0_i32_0 = arith.constant 0 : i32
    return %c0_i32, %arg0 : i32, i32
  }
  func.func @transform_2(%arg0: i32) -> (i32, i32) {
    %c0_i32 = arith.constant 0 : i32
    %c0_i32_0 = arith.constant 0 : i32
    return %arg0, %c0_i32 : i32, i32
  }
  func.func @transform_3(%arg0: i32) -> (i32, i32) {
    %c0_i32 = arith.constant 0 : i32
    %c0_i32_0 = arith.constant 0 : i32
    return %c0_i32, %arg0 : i32, i32
  }
  func.func @transform_4(%arg0: i32) -> (i32, i32) {
    %c0_i32 = arith.constant 0 : i32
    %c0_i32_0 = arith.constant 0 : i32
    %c0_i32_1 = arith.constant 0 : i32
    return %c0_i32, %c0_i32_0 : i32, i32
  }
  func.func @transform_5(%arg0: i32) -> (i32, i32) {
    %c0_i32 = arith.constant 0 : i32
    %c0_i32_0 = arith.constant 0 : i32
    %c0_i32_1 = arith.constant 0 : i32
    return %c0_i32, %c0_i32_0 : i32, i32
  }
  func.func @transform_6(%arg0: i32) -> (i32, i32) {
    %c0_i32 = arith.constant 0 : i32
    %c0_i32_0 = arith.constant 0 : i32
    %c0_i32_1 = arith.constant 0 : i32
    return %c0_i32, %c0_i32_0 : i32, i32
  }
  func.func @transform_7(%arg0: i32) -> (i32, i32) {
    %c0_i32 = arith.constant 0 : i32
    %c0_i32_0 = arith.constant 0 : i32
    %c0_i32_1 = arith.constant 0 : i32
    return %c0_i32, %c0_i32_0 : i32, i32
  }
  func.func @transform_8(%arg0: i32) -> (i32, i32) {
    %c0_i32 = arith.constant 0 : i32
    %c0_i32_0 = arith.constant 0 : i32
    %c0_i32_1 = arith.constant 0 : i32
    return %c0_i32, %c0_i32_0 : i32, i32
  }
  func.func @transform_9(%arg0: i32) -> (i32, i32) {
    %c0_i32 = arith.constant 0 : i32
    %c0_i32_0 = arith.constant 0 : i32
    %c0_i32_1 = arith.constant 0 : i32
    return %c0_i32, %c0_i32_0 : i32, i32
  }
  func.func @transform_10(%arg0: i32) -> (i32, i32) {
    %c0_i32 = arith.constant 0 : i32
    %c0_i32_0 = arith.constant 0 : i32
    %c0_i32_1 = arith.constant 0 : i32
    return %c0_i32, %c0_i32_0 : i32, i32
  }
  func.func @transform_11(%arg0: i32) -> (i32, i32) {
    %c0_i32 = arith.constant 0 : i32
    %c0_i32_0 = arith.constant 0 : i32
    %c0_i32_1 = arith.constant 0 : i32
    return %c0_i32, %c0_i32_0 : i32, i32
  }
  func.func @transform_12(%arg0: i32) -> (i32, i32) {
    %c0_i32 = arith.constant 0 : i32
    %c0_i32_0 = arith.constant 0 : i32
    %c0_i32_1 = arith.constant 0 : i32
    return %c0_i32, %c0_i32_0 : i32, i32
  }
  func.func @transform_13(%arg0: i32) -> (i32, i32) {
    %c0_i32 = arith.constant 0 : i32
    %c0_i32_0 = arith.constant 0 : i32
    %c0_i32_1 = arith.constant 0 : i32
    return %c0_i32, %c0_i32_0 : i32, i32
  }
  func.func @transform_14(%arg0: i32) -> (i32, i32) {
    %c0_i32 = arith.constant 0 : i32
    %c0_i32_0 = arith.constant 0 : i32
    %c0_i32_1 = arith.constant 0 : i32
    return %c0_i32, %c0_i32_0 : i32, i32
  }
  func.func @transform_15(%arg0: i32) -> (i32, i32) {
    %c0_i32 = arith.constant 0 : i32
    %c0_i32_0 = arith.constant 0 : i32
    %c0_i32_1 = arith.constant 0 : i32
    return %c0_i32, %c0_i32_0 : i32, i32
  }
  func.func @transform_16(%arg0: i32) -> (i32, i32) {
    %c0_i32 = arith.constant 0 : i32
    %c0_i32_0 = arith.constant 0 : i32
    %c0_i32_1 = arith.constant 0 : i32
    return %c0_i32, %c0_i32_0 : i32, i32
  }
  func.func @transform_17(%arg0: i32) -> (i32, i32) {
    %c0_i32 = arith.constant 0 : i32
    %c0_i32_0 = arith.constant 0 : i32
    %c0_i32_1 = arith.constant 0 : i32
    return %c0_i32, %c0_i32_0 : i32, i32
  }
  func.func @transform_18(%arg0: i32) -> (i32, i32) {
    %c0_i32 = arith.constant 0 : i32
    %c0_i32_0 = arith.constant 0 : i32
    %c0_i32_1 = arith.constant 0 : i32
    return %c0_i32, %c0_i32_0 : i32, i32
  }
}

</mosaic_0001>

<llo_original>
// kernel: tpu_custom_call.1
$region0: #{tpu_custom_call.1}
  #allocation0 [shape = 'u32[]', space=smem, size = 0x4, offset = 0x4, fixed_abs, tag = 'smem constant byte address 0x4 - core index']
  #allocation1 [shape = 'u32[72,128]{1,0:T(1,128)}', space=vmem, size = 0x9000, scoped, tag = 'internal scratch']
  #allocation2 [shape = 'f32[24,16]{1,0:T(8,128)}', space=vmem, size = 0x3000, scoped, tag = 'scratch operand']
  #allocation3 [shape = 'f32[24,16]{1,0:T(8,128)}', space=vmem, size = 0x3000, scoped, tag = 'scratch operand']
  %s0 = inlined_call_operand.vmem [shape: f32[384,8], index: 0, kind: input, shape index: {}]
  %s1 = inlined_call_operand.vmem [shape: f32[1,384], index: 1, kind: input, shape index: {}]
  %s2 = inlined_call_operand.vmem [shape: s32[384,1], index: 2, kind: input, shape index: {}]
  %s3 = inlined_call_operand.vmem [shape: s32[1,384], index: 3, kind: input, shape index: {}]
  %s4 = inlined_call_operand.vmem [shape: f32[24,8], index: 4, kind: input, shape index: {}]
  %s5 = inlined_call_operand.vmem [shape: f32[1,8], index: 5, kind: input, shape index: {}]
  %s6 = inlined_call_operand.vmem [shape: f32[1,8], index: 6, kind: input, shape index: {}]
  %s7 = inlined_call_operand.vmem [shape: f32[8,16], index: 7, kind: input, shape index: {}]
  %s8 = inlined_call_operand.vmem [shape: f32[1,16], index: 8, kind: input, shape index: {}]
  %s9 = inlined_call_operand.vmem [shape: f32[16,256], index: 9, kind: input, shape index: {}]
  %s10 = inlined_call_operand.vmem [shape: f32[8,32], index: 10, kind: input, shape index: {}]
  %s11 = inlined_call_operand.vmem [shape: f32[1,32], index: 11, kind: input, shape index: {}]
  %s12 = inlined_call_operand.vmem [shape: f32[32,384], index: 12, kind: input, shape index: {}]
  %s13 = inlined_call_operand.vmem [shape: f32[1,384], index: 13, kind: input, shape index: {}]
  %s14 = inlined_call_operand.vmem [shape: f32[256,16], index: 14, kind: input, shape index: {}]
  %s15 = inlined_call_operand.vmem [shape: f32[1,16], index: 15, kind: input, shape index: {}]
  %s16 = inlined_call_operand.vmem [shape: f32[16,128], index: 16, kind: input, shape index: {}]
  %s17 = inlined_call_operand.vmem [shape: f32[1,128], index: 17, kind: input, shape index: {}]
  %s18 = inlined_call_operand.hbm [shape: f32[24,128], index: 18, kind: output, shape index: {}]
  %s19 = sld [smem:[#allocation0]]
  $region113: #{tpu_custom_call.1} parent=0
    _
  %s21 = ssub.s32 1, %s19
  %s22 = scalar_select 0, %s21, %s19
  $region1: #{tpu_custom_call.1} parent=0
    #allocation4 [shape = 'u8[12288]{0}', space=vmem, size = 0x3000, scoped, tag = 'output window, operand 0, single buffered']
    #allocation5 [shape = 's32[2]{0}', space=sflag, size = 0x8, scoped, tag = 'scoped memory for tpu_custom_call.1']
    %23 = vsyncpa [#allocation5], 0
    loop: start=0, step=1, limit=5
    $region2: #{tpu_custom_call.1} parent=1 // loop_pre_header
      _
    $region3: #{tpu_custom_call.1} parent=1 // loop_header
      %s25 = sphi 0, %s29
      %p26 = scmp.ge.s32.totalorder %s25, 5
      %s35 = sphi 0, %s37
      %s38 = sphi 0, %s35
      %s39 = sphi 0, %s38
      %s55 = sphi 0, %s39
      %s61 = sphi 0, %s63
      %s64 = sphi 0, %s61
      %s65 = sphi 0, %s64
      %s81 = sphi 0, %s65
      %s87 = sphi 0, %s89
      %s90 = sphi 0, %s87
      %s91 = sphi 0, %s90
      %s107 = sphi 0, %s91
      %s113 = sphi 0, %s115
      %s116 = sphi 0, %s113
      %s117 = sphi 0, %s116
      %s133 = sphi 0, %s117
      %s137 = sphi 0, %s137
      %s139 = sphi 0, %s137
      %s140 = sphi 0, %s139
      %s154 = sphi 0, %s140
      %s158 = sphi 0, %s158
      %s160 = sphi 0, %s158
      %s161 = sphi 0, %s160
      %s175 = sphi 0, %s161
      %s179 = sphi 0, %s179
      %s181 = sphi 0, %s179
      %s182 = sphi 0, %s181
      %s196 = sphi 0, %s182
      %s200 = sphi 0, %s200
      %s202 = sphi 0, %s200
      %s203 = sphi 0, %s202
      %s217 = sphi 0, %s203
      %s221 = sphi 0, %s221
      %s223 = sphi 0, %s221
      %s224 = sphi 0, %s223
      %s238 = sphi 0, %s224
      %s242 = sphi 0, %s242
      %s244 = sphi 0, %s242
      %s245 = sphi 0, %s244
      %s259 = sphi 0, %s245
      %s263 = sphi 0, %s263
      %s265 = sphi 0, %s263
      %s266 = sphi 0, %s265
      %s280 = sphi 0, %s266
      %s284 = sphi 0, %s284
      %s286 = sphi 0, %s284
      %s287 = sphi 0, %s286
      %s301 = sphi 0, %s287
      %s305 = sphi 0, %s305
      %s307 = sphi 0, %s305
      %s308 = sphi 0, %s307
      %s322 = sphi 0, %s308
      %s326 = sphi 0, %s326
      %s328 = sphi 0, %s326
      %s329 = sphi 0, %s328
      %s343 = sphi 0, %s329
      %s347 = sphi 0, %s347
      %s349 = sphi 0, %s347
      %s350 = sphi 0, %s349
      %s364 = sphi 0, %s350
      %s368 = sphi 0, %s368
      %s370 = sphi 0, %s368
      %s371 = sphi 0, %s370
      %s385 = sphi 0, %s371
      %s389 = sphi 0, %s389
      %s391 = sphi 0, %s389
      %s392 = sphi 0, %s391
      %s406 = sphi 0, %s392
      %s410 = sphi 0, %s410
      %s412 = sphi 0, %s410
      %s413 = sphi 0, %s412
      %s427 = sphi 0, %s413
      %s431 = sphi 0, %s431
      %s433 = sphi 0, %s431
      %s434 = sphi 0, %s433
      %s448 = sphi 0, %s434
    $region4: #{tpu_custom_call.1} parent=1 // loop_header_branch
      %28 = sbr.rel (%p26) target = $region8
    $region5: #{tpu_custom_call.1} parent=1 // loop_body
      %s30 = ssub.s32 %s25, 1
      %s31 = ssub.s32 %s25, 2
      %s32 = sadd.s32 %s25, 1
      %s33 = ssub.s32 %s25, %s32
      %p34 = scmp.eq.s32.totalorder %s33, 0
      %s36 = sadd.s32 %s35, 1
      %s37 = scalar_select %p34, %s35, %s36
      %p40 = pneg %p34
      %p41 = scmp.eq.s32.totalorder %s25, 2
      %p42 = por %p40, %p41
      %p43 = scmp.ne.s32.totalorder %s35, %s38
      %p44 = scmp.eq.s32.totalorder %s25, 0
      %p45 = por %p43, %p44
      %p46 = scmp.ne.s32.totalorder %s35, %s38
      %p47 = scmp.eq.s32.totalorder %s30, 2
      %p48 = por %p46, %p47
      %p49 = scmp.ne.s32.totalorder %s38, %s39
      %p50 = scmp.eq.s32.totalorder %s30, 0
      %p51 = por %p49, %p50
      %p52 = scmp.ne.s32.totalorder %s38, %s39
      %p53 = scmp.eq.s32.totalorder %s31, 2
      %p54 = por %p52, %p53
      %p56 = scmp.ne.s32.totalorder %s39, %s55
      %p57 = scmp.eq.s32.totalorder %s31, 0
      %p58 = por %p56, %p57
      %s59 = ssub.s32 %s25, %s32
      %p60 = scmp.eq.s32.totalorder %s59, 0
      %s62 = sadd.s32 %s61, 1
      %s63 = scalar_select %p60, %s61, %s62
      %p66 = pneg %p60
      %p67 = scmp.eq.s32.totalorder %s25, 2
      %p68 = por %p66, %p67
      %p69 = scmp.ne.s32.totalorder %s61, %s64
      %p70 = scmp.eq.s32.totalorder %s25, 0
      %p71 = por %p69, %p70
      %p72 = scmp.ne.s32.totalorder %s61, %s64
      %p73 = scmp.eq.s32.totalorder %s30, 2
      %p74 = por %p72, %p73
      %p75 = scmp.ne.s32.totalorder %s64, %s65
      %p76 = scmp.eq.s32.totalorder %s30, 0
      %p77 = por %p75, %p76
      %p78 = scmp.ne.s32.totalorder %s64, %s65
      %p79 = scmp.eq.s32.totalorder %s31, 2
      %p80 = por %p78, %p79
      %p82 = scmp.ne.s32.totalorder %s65, %s81
      %p83 = scmp.eq.s32.totalorder %s31, 0
      %p84 = por %p82, %p83
      %s85 = ssub.s32 %s25, %s32
      %p86 = scmp.eq.s32.totalorder %s85, 0
      %s88 = sadd.s32 %s87, 1
      %s89 = scalar_select %p86, %s87, %s88
      %p92 = pneg %p86
      %p93 = scmp.eq.s32.totalorder %s25, 2
      %p94 = por %p92, %p93
      %p95 = scmp.ne.s32.totalorder %s87, %s90
      %p96 = scmp.eq.s32.totalorder %s25, 0
      %p97 = por %p95, %p96
      %p98 = scmp.ne.s32.totalorder %s87, %s90
      %p99 = scmp.eq.s32.totalorder %s30, 2
      %p100 = por %p98, %p99
      %p101 = scmp.ne.s32.totalorder %s90, %s91
      %p102 = scmp.eq.s32.totalorder %s30, 0
      %p103 = por %p101, %p102
      %p104 = scmp.ne.s32.totalorder %s90, %s91
      %p105 = scmp.eq.s32.totalorder %s31, 2
      %p106 = por %p104, %p105
      %p108 = scmp.ne.s32.totalorder %s91, %s107
      %p109 = scmp.eq.s32.totalorder %s31, 0
      %p110 = por %p108, %p109
      %s111 = ssub.s32 %s25, %s32
      %p112 = scmp.eq.s32.totalorder %s111, 0
      %s114 = sadd.s32 %s113, 1
      %s115 = scalar_select %p112, %s113, %s114
      %p118 = pneg %p112
      %p119 = scmp.eq.s32.totalorder %s25, 2
      %p120 = por %p118, %p119
      %p121 = scmp.ne.s32.totalorder %s113, %s116
      %p122 = scmp.eq.s32.totalorder %s25, 0
      %p123 = por %p121, %p122
      %p124 = scmp.ne.s32.totalorder %s113, %s116
      %p125 = scmp.eq.s32.totalorder %s30, 2
      %p126 = por %p124, %p125
      %p127 = scmp.ne.s32.totalorder %s116, %s117
      %p128 = scmp.eq.s32.totalorder %s30, 0
      %p129 = por %p127, %p128
      %p130 = scmp.ne.s32.totalorder %s116, %s117
      %p131 = scmp.eq.s32.totalorder %s31, 2
      %p132 = por %p130, %p131
      %p134 = scmp.ne.s32.totalorder %s117, %s133
      %p135 = scmp.eq.s32.totalorder %s31, 0
      %p136 = por %p134, %p135
      %s138 = sadd.s32 %s137, 1
      %p141 = scmp.eq.s32.totalorder %s25, 2
      %p142 = scmp.ne.s32.totalorder %s137, %s139
      %p143 = scmp.eq.s32.totalorder %s25, 0
      %p144 = por %p142, %p143
      %p145 = scmp.ne.s32.totalorder %s137, %s139
      %p146 = scmp.eq.s32.totalorder %s30, 2
      %p147 = por %p145, %p146
      %p148 = scmp.ne.s32.totalorder %s139, %s140
      %p149 = scmp.eq.s32.totalorder %s30, 0
      %p150 = por %p148, %p149
      %p151 = scmp.ne.s32.totalorder %s139, %s140
      %p152 = scmp.eq.s32.totalorder %s31, 2
      %p153 = por %p151, %p152
      %p155 = scmp.ne.s32.totalorder %s140, %s154
      %p156 = scmp.eq.s32.totalorder %s31, 0
      %p157 = por %p155, %p156
      %s159 = sadd.s32 %s158, 1
      %p162 = scmp.eq.s32.totalorder %s25, 2
      %p163 = scmp.ne.s32.totalorder %s158, %s160
      %p164 = scmp.eq.s32.totalorder %s25, 0
      %p165 = por %p163, %p164
      %p166 = scmp.ne.s32.totalorder %s158, %s160
      %p167 = scmp.eq.s32.totalorder %s30, 2
      %p168 = por %p166, %p167
      %p169 = scmp.ne.s32.totalorder %s160, %s161
      %p170 = scmp.eq.s32.totalorder %s30, 0
      %p171 = por %p169, %p170
      %p172 = scmp.ne.s32.totalorder %s160, %s161
      %p173 = scmp.eq.s32.totalorder %s31, 2
      %p174 = por %p172, %p173
      %p176 = scmp.ne.s32.totalorder %s161, %s175
      %p177 = scmp.eq.s32.totalorder %s31, 0
      %p178 = por %p176, %p177
      %s180 = sadd.s32 %s179, 1
      %p183 = scmp.eq.s32.totalorder %s25, 2
      %p184 = scmp.ne.s32.totalorder %s179, %s181
      %p185 = scmp.eq.s32.totalorder %s25, 0
      %p186 = por %p184, %p185
      %p187 = scmp.ne.s32.totalorder %s179, %s181
      %p188 = scmp.eq.s32.totalorder %s30, 2
      %p189 = por %p187, %p188
      %p190 = scmp.ne.s32.totalorder %s181, %s182
      %p191 = scmp.eq.s32.totalorder %s30, 0
      %p192 = por %p190, %p191
      %p193 = scmp.ne.s32.totalorder %s181, %s182
      %p194 = scmp.eq.s32.totalorder %s31, 2
      %p195 = por %p193, %p194
      %p197 = scmp.ne.s32.totalorder %s182, %s196
      %p198 = scmp.eq.s32.totalorder %s31, 0
      %p199 = por %p197, %p198
      %s201 = sadd.s32 %s200, 1
      %p204 = scmp.eq.s32.totalorder %s25, 2
      %p205 = scmp.ne.s32.totalorder %s200, %s202
      %p206 = scmp.eq.s32.totalorder %s25, 0
      %p207 = por %p205, %p206
      %p208 = scmp.ne.s32.totalorder %s200, %s202
      %p209 = scmp.eq.s32.totalorder %s30, 2
      %p210 = por %p208, %p209
      %p211 = scmp.ne.s32.totalorder %s202, %s203
      %p212 = scmp.eq.s32.totalorder %s30, 0
      %p213 = por %p211, %p212
      %p214 = scmp.ne.s32.totalorder %s202, %s203
      %p215 = scmp.eq.s32.totalorder %s31, 2
      %p216 = por %p214, %p215
      %p218 = scmp.ne.s32.totalorder %s203, %s217
      %p219 = scmp.eq.s32.totalorder %s31, 0
      %p220 = por %p218, %p219
      %s222 = sadd.s32 %s221, 1
      %p225 = scmp.eq.s32.totalorder %s25, 2
      %p226 = scmp.ne.s32.totalorder %s221, %s223
      %p227 = scmp.eq.s32.totalorder %s25, 0
      %p228 = por %p226, %p227
      %p229 = scmp.ne.s32.totalorder %s221, %s223
      %p230 = scmp.eq.s32.totalorder %s30, 2
      %p231 = por %p229, %p230
      %p232 = scmp.ne.s32.totalorder %s223, %s224
      %p233 = scmp.eq.s32.totalorder %s30, 0
      %p234 = por %p232, %p233
      %p235 = scmp.ne.s32.totalorder %s223, %s224
      %p236 = scmp.eq.s32.totalorder %s31, 2
      %p237 = por %p235, %p236
      %p239 = scmp.ne.s32.totalorder %s224, %s238
      %p240 = scmp.eq.s32.totalorder %s31, 0
      %p241 = por %p239, %p240
      %s243 = sadd.s32 %s242, 1
      %p246 = scmp.eq.s32.totalorder %s25, 2
      %p247 = scmp.ne.s32.totalorder %s242, %s244
      %p248 = scmp.eq.s32.totalorder %s25, 0
      %p249 = por %p247, %p248
      %p250 = scmp.ne.s32.totalorder %s242, %s244
      %p251 = scmp.eq.s32.totalorder %s30, 2
      %p252 = por %p250, %p251
      %p253 = scmp.ne.s32.totalorder %s244, %s245
      %p254 = scmp.eq.s32.totalorder %s30, 0
      %p255 = por %p253, %p254
      %p256 = scmp.ne.s32.totalorder %s244, %s245
      %p257 = scmp.eq.s32.totalorder %s31, 2
      %p258 = por %p256, %p257
      %p260 = scmp.ne.s32.totalorder %s245, %s259
      %p261 = scmp.eq.s32.totalorder %s31, 0
      %p262 = por %p260, %p261
      %s264 = sadd.s32 %s263, 1
      %p267 = scmp.eq.s32.totalorder %s25, 2
      %p268 = scmp.ne.s32.totalorder %s263, %s265
      %p269 = scmp.eq.s32.totalorder %s25, 0
      %p270 = por %p268, %p269
      %p271 = scmp.ne.s32.totalorder %s263, %s265
      %p272 = scmp.eq.s32.totalorder %s30, 2
      %p273 = por %p271, %p272
      %p274 = scmp.ne.s32.totalorder %s265, %s266
      %p275 = scmp.eq.s32.totalorder %s30, 0
      %p276 = por %p274, %p275
      %p277 = scmp.ne.s32.totalorder %s265, %s266
      %p278 = scmp.eq.s32.totalorder %s31, 2
      %p279 = por %p277, %p278
      %p281 = scmp.ne.s32.totalorder %s266, %s280
      %p282 = scmp.eq.s32.totalorder %s31, 0
      %p283 = por %p281, %p282
      %s285 = sadd.s32 %s284, 1
      %p288 = scmp.eq.s32.totalorder %s25, 2
      %p289 = scmp.ne.s32.totalorder %s284, %s286
      %p290 = scmp.eq.s32.totalorder %s25, 0
      %p291 = por %p289, %p290
      %p292 = scmp.ne.s32.totalorder %s284, %s286
      %p293 = scmp.eq.s32.totalorder %s30, 2
      %p294 = por %p292, %p293
      %p295 = scmp.ne.s32.totalorder %s286, %s287
      %p296 = scmp.eq.s32.totalorder %s30, 0
      %p297 = por %p295, %p296
      %p298 = scmp.ne.s32.totalorder %s286, %s287
      %p299 = scmp.eq.s32.totalorder %s31, 2
      %p300 = por %p298, %p299
      %p302 = scmp.ne.s32.totalorder %s287, %s301
      %p303 = scmp.eq.s32.totalorder %s31, 0
      %p304 = por %p302, %p303
      %s306 = sadd.s32 %s305, 1
      %p309 = scmp.eq.s32.totalorder %s25, 2
      %p310 = scmp.ne.s32.totalorder %s305, %s307
      %p311 = scmp.eq.s32.totalorder %s25, 0
      %p312 = por %p310, %p311
      %p313 = scmp.ne.s32.totalorder %s305, %s307
      %p314 = scmp.eq.s32.totalorder %s30, 2
      %p315 = por %p313, %p314
      %p316 = scmp.ne.s32.totalorder %s307, %s308
      %p317 = scmp.eq.s32.totalorder %s30, 0
      %p318 = por %p316, %p317
      %p319 = scmp.ne.s32.totalorder %s307, %s308
      %p320 = scmp.eq.s32.totalorder %s31, 2
      %p321 = por %p319, %p320
      %p323 = scmp.ne.s32.totalorder %s308, %s322
      %p324 = scmp.eq.s32.totalorder %s31, 0
      %p325 = por %p323, %p324
      %s327 = sadd.s32 %s326, 1
      %p330 = scmp.eq.s32.totalorder %s25, 2
      %p331 = scmp.ne.s32.totalorder %s326, %s328
      %p332 = scmp.eq.s32.totalorder %s25, 0
      %p333 = por %p331, %p332
      %p334 = scmp.ne.s32.totalorder %s326, %s328
      %p335 = scmp.eq.s32.totalorder %s30, 2
      %p336 = por %p334, %p335
      %p337 = scmp.ne.s32.totalorder %s328, %s329
      %p338 = scmp.eq.s32.totalorder %s30, 0
      %p339 = por %p337, %p338
      %p340 = scmp.ne.s32.totalorder %s328, %s329
      %p341 = scmp.eq.s32.totalorder %s31, 2
      %p342 = por %p340, %p341
      %p344 = scmp.ne.s32.totalorder %s329, %s343
      %p345 = scmp.eq.s32.totalorder %s31, 0
      %p346 = por %p344, %p345
      %s348 = sadd.s32 %s347, 1
      %p351 = scmp.eq.s32.totalorder %s25, 2
      %p352 = scmp.ne.s32.totalorder %s347, %s349
      %p353 = scmp.eq.s32.totalorder %s25, 0
      %p354 = por %p352, %p353
      %p355 = scmp.ne.s32.totalorder %s347, %s349
      %p356 = scmp.eq.s32.totalorder %s30, 2
      %p357 = por %p355, %p356
      %p358 = scmp.ne.s32.totalorder %s349, %s350
      %p359 = scmp.eq.s32.totalorder %s30, 0
      %p360 = por %p358, %p359
      %p361 = scmp.ne.s32.totalorder %s349, %s350
      %p362 = scmp.eq.s32.totalorder %s31, 2
      %p363 = por %p361, %p362
      %p365 = scmp.ne.s32.totalorder %s350, %s364
      %p366 = scmp.eq.s32.totalorder %s31, 0
      %p367 = por %p365, %p366
      %s369 = sadd.s32 %s368, 1
      %p372 = scmp.eq.s32.totalorder %s25, 2
      %p373 = scmp.ne.s32.totalorder %s368, %s370
      %p374 = scmp.eq.s32.totalorder %s25, 0
      %p375 = por %p373, %p374
      %p376 = scmp.ne.s32.totalorder %s368, %s370
      %p377 = scmp.eq.s32.totalorder %s30, 2
      %p378 = por %p376, %p377
      %p379 = scmp.ne.s32.totalorder %s370, %s371
      %p380 = scmp.eq.s32.totalorder %s30, 0
      %p381 = por %p379, %p380
      %p382 = scmp.ne.s32.totalorder %s370, %s371
      %p383 = scmp.eq.s32.totalorder %s31, 2
      %p384 = por %p382, %p383
      %p386 = scmp.ne.s32.totalorder %s371, %s385
      %p387 = scmp.eq.s32.totalorder %s31, 0
      %p388 = por %p386, %p387
      %s390 = sadd.s32 %s389, 1
      %p393 = scmp.eq.s32.totalorder %s25, 2
      %p394 = scmp.ne.s32.totalorder %s389, %s391
      %p395 = scmp.eq.s32.totalorder %s25, 0
      %p396 = por %p394, %p395
      %p397 = scmp.ne.s32.totalorder %s389, %s391
      %p398 = scmp.eq.s32.totalorder %s30, 2
      %p399 = por %p397, %p398
      %p400 = scmp.ne.s32.totalorder %s391, %s392
      %p401 = scmp.eq.s32.totalorder %s30, 0
      %p402 = por %p400, %p401
      %p403 = scmp.ne.s32.totalorder %s391, %s392
      %p404 = scmp.eq.s32.totalorder %s31, 2
      %p405 = por %p403, %p404
      %p407 = scmp.ne.s32.totalorder %s392, %s406
      %p408 = scmp.eq.s32.totalorder %s31, 0
      %p409 = por %p407, %p408
      %s411 = sadd.s32 %s410, 1
      %p414 = scmp.eq.s32.totalorder %s25, 2
      %p415 = scmp.ne.s32.totalorder %s410, %s412
      %p416 = scmp.eq.s32.totalorder %s25, 0
      %p417 = por %p415, %p416
      %p418 = scmp.ne.s32.totalorder %s410, %s412
      %p419 = scmp.eq.s32.totalorder %s30, 2
      %p420 = por %p418, %p419
      %p421 = scmp.ne.s32.totalorder %s412, %s413
      %p422 = scmp.eq.s32.totalorder %s30, 0
      %p423 = por %p421, %p422
      %p424 = scmp.ne.s32.totalorder %s412, %s413
      %p425 = scmp.eq.s32.totalorder %s31, 2
      %p426 = por %p424, %p425
      %p428 = scmp.ne.s32.totalorder %s413, %s427
      %p429 = scmp.eq.s32.totalorder %s31, 0
      %p430 = por %p428, %p429
      %s432 = sadd.s32 %s431, 1
      %p435 = scmp.eq.s32.totalorder %s25, 2
      %p436 = scmp.ne.s32.totalorder %s431, %s433
      %p437 = scmp.eq.s32.totalorder %s25, 0
      %p438 = por %p436, %p437
      %p439 = scmp.ne.s32.totalorder %s431, %s433
      %p440 = scmp.eq.s32.totalorder %s30, 2
      %p441 = por %p439, %p440
      %p442 = scmp.ne.s32.totalorder %s433, %s434
      %p443 = scmp.eq.s32.totalorder %s30, 0
      %p444 = por %p442, %p443
      %p445 = scmp.ne.s32.totalorder %s433, %s434
      %p446 = scmp.eq.s32.totalorder %s31, 2
      %p447 = por %p445, %p446
      %p449 = scmp.ne.s32.totalorder %s434, %s448
      %p450 = scmp.eq.s32.totalorder %s31, 0
      %p451 = por %p449, %p450
      %p452 = scmp.le.s32.totalorder 1, %s25
      %p453 = scmp.lt.s32.totalorder %s25, 4
      %p454 = pnand %p452, %p453
      %p455 = pneg %p454
      // Predicated region
      $region9: #{tpu_custom_call.1} parent=5 // pred_check
        _
      $region10: #{tpu_custom_call.1} parent=5 // pred_check_branch
        %457 = sbr.rel (%p454) target = $region12
      $region11: #{tpu_custom_call.1} parent=5 // pred_region
        %s458 = ssub.s32 %s25, 1
        // Predicated region
        $region13: #{tpu_custom_call.1} parent=11 // pred_check
          %p459 = pneg %p150
        $region14: #{tpu_custom_call.1} parent=11 // pred_check_branch
          %461 = sbr.rel (%p459) target = $region16
        $region15: #{tpu_custom_call.1} parent=11 // pred_region
          _
        $region16: #{tpu_custom_call.1} parent=11 // pred_fallthru
          _
        // Predicated region
        $region17: #{tpu_custom_call.1} parent=11 // pred_check
          %p462 = pneg %p171
        $region18: #{tpu_custom_call.1} parent=11 // pred_check_branch
          %464 = sbr.rel (%p462) target = $region20
        $region19: #{tpu_custom_call.1} parent=11 // pred_region
          _
        $region20: #{tpu_custom_call.1} parent=11 // pred_fallthru
          _
        // Predicated region
        $region21: #{tpu_custom_call.1} parent=11 // pred_check
          %p465 = pneg %p192
        $region22: #{tpu_custom_call.1} parent=11 // pred_check_branch
          %467 = sbr.rel (%p465) target = $region24
        $region23: #{tpu_custom_call.1} parent=11 // pred_region
          _
        $region24: #{tpu_custom_call.1} parent=11 // pred_fallthru
          _
        // Predicated region
        $region25: #{tpu_custom_call.1} parent=11 // pred_check
          %p468 = pneg %p213
        $region26: #{tpu_custom_call.1} parent=11 // pred_check_branch
          %470 = sbr.rel (%p468) target = $region28
        $region27: #{tpu_custom_call.1} parent=11 // pred_region
          _
        $region28: #{tpu_custom_call.1} parent=11 // pred_fallthru
          _
        // Predicated region
        $region29: #{tpu_custom_call.1} parent=11 // pred_check
          %p471 = pneg %p234
        $region30: #{tpu_custom_call.1} parent=11 // pred_check_branch
          %473 = sbr.rel (%p471) target = $region32
        $region31: #{tpu_custom_call.1} parent=11 // pred_region
          _
        $region32: #{tpu_custom_call.1} parent=11 // pred_fallthru
          _
        // Predicated region
        $region33: #{tpu_custom_call.1} parent=11 // pred_check
          %p474 = pneg %p255
        $region34: #{tpu_custom_call.1} parent=11 // pred_check_branch
          %476 = sbr.rel (%p474) target = $region36
        $region35: #{tpu_custom_call.1} parent=11 // pred_region
          _
        $region36: #{tpu_custom_call.1} parent=11 // pred_fallthru
          _
        // Predicated region
        $region37: #{tpu_custom_call.1} parent=11 // pred_check
          %p477 = pneg %p276
        $region38: #{tpu_custom_call.1} parent=11 // pred_check_branch
          %479 = sbr.rel (%p477) target = $region40
        $region39: #{tpu_custom_call.1} parent=11 // pred_region
          _
        $region40: #{tpu_custom_call.1} parent=11 // pred_fallthru
          _
        // Predicated region
        $region41: #{tpu_custom_call.1} parent=11 // pred_check
          %p480 = pneg %p297
        $region42: #{tpu_custom_call.1} parent=11 // pred_check_branch
          %482 = sbr.rel (%p480) target = $region44
        $region43: #{tpu_custom_call.1} parent=11 // pred_region
          _
        $region44: #{tpu_custom_call.1} parent=11 // pred_fallthru
          _
        // Predicated region
        $region45: #{tpu_custom_call.1} parent=11 // pred_check
          %p483 = pneg %p318
        $region46: #{tpu_custom_call.1} parent=11 // pred_check_branch
          %485 = sbr.rel (%p483) target = $region48
        $region47: #{tpu_custom_call.1} parent=11 // pred_region
          _
        $region48: #{tpu_custom_call.1} parent=11 // pred_fallthru
          _
        // Predicated region
        $region49: #{tpu_custom_call.1} parent=11 // pred_check
          %p486 = pneg %p339
        $region50: #{tpu_custom_call.1} parent=11 // pred_check_branch
          %488 = sbr.rel (%p486) target = $region52
        $region51: #{tpu_custom_call.1} parent=11 // pred_region
          _
        $region52: #{tpu_custom_call.1} parent=11 // pred_fallthru
          _
        // Predicated region
        $region53: #{tpu_custom_call.1} parent=11 // pred_check
          %p489 = pneg %p360
        $region54: #{tpu_custom_call.1} parent=11 // pred_check_branch
          %491 = sbr.rel (%p489) target = $region56
        $region55: #{tpu_custom_call.1} parent=11 // pred_region
          _
        $region56: #{tpu_custom_call.1} parent=11 // pred_fallthru
          _
        // Predicated region
        $region57: #{tpu_custom_call.1} parent=11 // pred_check
          %p492 = pneg %p381
        $region58: #{tpu_custom_call.1} parent=11 // pred_check_branch
          %494 = sbr.rel (%p492) target = $region60
        $region59: #{tpu_custom_call.1} parent=11 // pred_region
          _
        $region60: #{tpu_custom_call.1} parent=11 // pred_fallthru
          _
        // Predicated region
        $region61: #{tpu_custom_call.1} parent=11 // pred_check
          %p495 = pneg %p402
        $region62: #{tpu_custom_call.1} parent=11 // pred_check_branch
          %497 = sbr.rel (%p495) target = $region64
        $region63: #{tpu_custom_call.1} parent=11 // pred_region
          _
        $region64: #{tpu_custom_call.1} parent=11 // pred_fallthru
          _
        // Predicated region
        $region65: #{tpu_custom_call.1} parent=11 // pred_check
          %p498 = pneg %p423
        $region66: #{tpu_custom_call.1} parent=11 // pred_check_branch
          %500 = sbr.rel (%p498) target = $region68
        $region67: #{tpu_custom_call.1} parent=11 // pred_region
          _
        $region68: #{tpu_custom_call.1} parent=11 // pred_fallthru
          _
      $region12: #{tpu_custom_call.1} parent=5 // pred_fallthru
        _
      %p501 = scmp.lt.s32.totalorder %s25, 3
      // Predicated region
      $region69: #{tpu_custom_call.1} parent=5 // pred_check
        %p502 = pneg %p501
      $region70: #{tpu_custom_call.1} parent=5 // pred_check_branch
        %504 = sbr.rel (%p502) target = $region72
      $region71: #{tpu_custom_call.1} parent=5 // pred_region
        // Predicated region
        $region73: #{tpu_custom_call.1} parent=71 // pred_check
          %p505 = pneg %p45
        $region74: #{tpu_custom_call.1} parent=71 // pred_check_branch
          %507 = sbr.rel (%p505) target = $region76
        $region75: #{tpu_custom_call.1} parent=71 // pred_region
          %s508 = smul.u32 16, %s25
          %p509 = scmp.lt.s32.totalorder %s508, 47
          %s510 = scalar_select %p509, %s508, 47
          %s511 = smul.addr %s510, 8
          %s512 = scalar_lea.vmem %s0, %s511
          %s513 = smul.u32 16, %s25
        $region76: #{tpu_custom_call.1} parent=71 // pred_fallthru
          _
        // Predicated region
        $region77: #{tpu_custom_call.1} parent=71 // pred_check
          %p514 = pneg %p71
        $region78: #{tpu_custom_call.1} parent=71 // pred_check_branch
          %516 = sbr.rel (%p514) target = $region80
        $region79: #{tpu_custom_call.1} parent=71 // pred_region
          %p517 = scmp.lt.s32.totalorder %s25, 2
          %s518 = scalar_select %p517, %s25, 2
          %s519 = scalar_lea.vmem %s1, %s518
        $region80: #{tpu_custom_call.1} parent=71 // pred_fallthru
          _
        // Predicated region
        $region81: #{tpu_custom_call.1} parent=71 // pred_check
          %p520 = pneg %p97
        $region82: #{tpu_custom_call.1} parent=71 // pred_check_branch
          %522 = sbr.rel (%p520) target = $region84
        $region83: #{tpu_custom_call.1} parent=71 // pred_region
          %s523 = smul.u32 16, %s25
          %p524 = scmp.lt.s32.totalorder %s523, 47
          %s525 = scalar_select %p524, %s523, 47
          %s526 = smul.addr %s525, 8
          %s527 = scalar_lea.vmem %s2, %s526
          %s528 = smul.u32 16, %s25
        $region84: #{tpu_custom_call.1} parent=71 // pred_fallthru
          _
        // Predicated region
        $region85: #{tpu_custom_call.1} parent=71 // pred_check
          %p529 = pneg %p123
        $region86: #{tpu_custom_call.1} parent=71 // pred_check_branch
          %531 = sbr.rel (%p529) target = $region88
        $region87: #{tpu_custom_call.1} parent=71 // pred_region
          %p532 = scmp.lt.s32.totalorder %s25, 2
          %s533 = scalar_select %p532, %s25, 2
          %s534 = scalar_lea.vmem %s3, %s533
        $region88: #{tpu_custom_call.1} parent=71 // pred_fallthru
          _
      $region72: #{tpu_custom_call.1} parent=5 // pred_fallthru
        _
      %p535 = scmp.le.s32.totalorder 1, %s25
      %p536 = scmp.lt.s32.totalorder %s25, 4
      %p537 = pnand %p535, %p536
      %p538 = pneg %p537
      // Predicated region
      $region89: #{tpu_custom_call.1} parent=5 // pred_check
        _
      $region90: #{tpu_custom_call.1} parent=5 // pred_check_branch
        %540 = sbr.rel (%p537) target = $region92
      $region91: #{tpu_custom_call.1} parent=5 // pred_region
        %s541 = ssub.s32 %s25, 1
        %s542 = smul.u32 16, %s30
        %p543 = scmp.lt.s32.totalorder %s542, 47
        %s544 = scalar_select %p543, %s542, 47
        %s545 = smul.addr %s544, 8
        %s546 = scalar_lea.vmem %s0, %s545
        %p547 = pneg %p51
        %p548 = pneg %p48
        %p549 = scmp.lt.s32.totalorder %s30, 2
        %s550 = scalar_select %p549, %s30, 2
        %s551 = scalar_lea.vmem %s1, %s550
        %p552 = pneg %p77
        %p553 = pneg %p74
        %s554 = smul.u32 16, %s30
        %p555 = scmp.lt.s32.totalorder %s554, 47
        %s556 = scalar_select %p555, %s554, 47
        %s557 = smul.addr %s556, 8
        %s558 = scalar_lea.vmem %s2, %s557
        %p559 = pneg %p103
        %p560 = pneg %p100
        %p561 = scmp.lt.s32.totalorder %s30, 2
        %s562 = scalar_select %p561, %s30, 2
        %s563 = scalar_lea.vmem %s3, %s562
        %p564 = pneg %p129
        %p565 = pneg %p126
        %p566 = pneg %p150
        %p567 = pneg %p147
        %p568 = pneg %p171
        %p569 = pneg %p168
        %p570 = pneg %p192
        %p571 = pneg %p189
        %p572 = pneg %p213
        %p573 = pneg %p210
        %p574 = pneg %p234
        %p575 = pneg %p231
        %p576 = pneg %p255
        %p577 = pneg %p252
        %p578 = pneg %p276
        %p579 = pneg %p273
        %p580 = pneg %p297
        %p581 = pneg %p294
        %p582 = pneg %p318
        %p583 = pneg %p315
        %p584 = pneg %p339
        %p585 = pneg %p336
        %p586 = pneg %p360
        %p587 = pneg %p357
        %p588 = pneg %p381
        %p589 = pneg %p378
        %p590 = pneg %p402
        %p591 = pneg %p399
        %p592 = pneg %p423
        %p593 = pneg %p420
        %p594 = pneg %p444
        %p595 = pneg %p441
        %s596 = smul.u32 16, %s30
        %p597 = scmp.lt.s32.totalorder %s596, 47
        %s598 = scalar_select %p597, %s596, 47
        %s599 = smul.addr %s598, 8
        %s600 = scalar_lea.vmem %s0, %s599
        %s601 = smul.u32 16, %s30
        %p602 = scmp.lt.s32.totalorder %s30, 2
        %s603 = scalar_select %p602, %s30, 2
        %s604 = scalar_lea.vmem %s1, %s603
        %s605 = smul.u32 16, %s30
        %p606 = scmp.lt.s32.totalorder %s605, 47
        %s607 = scalar_select %p606, %s605, 47
        %s608 = smul.addr %s607, 8
        %s609 = scalar_lea.vmem %s2, %s608
        %s610 = smul.u32 16, %s30
        %p611 = scmp.lt.s32.totalorder %s30, 2
        %s612 = scalar_select %p611, %s30, 2
        %s613 = scalar_lea.vmem %s3, %s612
        %p614 = scmp.eq.s32.totalorder %s30, 0
        // Predicated region
        $region93: #{tpu_custom_call.1} parent=91 // pred_check
          %p615 = pneg %p614
        $region94: #{tpu_custom_call.1} parent=91 // pred_check_branch
          %617 = sbr.rel (%p615) target = $region96
        $region95: #{tpu_custom_call.1} parent=91 // pred_region
          %v618 = vld [vmem:[%s4] sm:$0xff]
          %v619 = vld [vmem:[%s4 + $0x8] sm:$0xff]
          %v620 = vld [vmem:[%s4 + $0x10] sm:$0xff]
          %v621 = vld [vmem:[%s5] sm:$0x1]
          %v623 = vperm.slane %v621, 0
          %v625 = vmul.f32 %v618, %v623
          %v626 = vmul.f32 %v619, %v623
          %v627 = vmul.f32 %v620, %v623
          %v628 = vld [vmem:[%s6] sm:$0x1]
          %v630 = vperm.slane %v628, 0
          %v632 = vadd.f32 %v625, %v630
          %v633 = vadd.f32 %v626, %v630
          %v634 = vadd.f32 %v627, %v630
          %v635 = vmax.f32 %v632, 0.0
          %v636 = vmax.f32 %v633, 0.0
          %v637 = vmax.f32 %v634, 0.0
          %v638 = vld [vmem:[%s7] sm:$0xff]
          %v639 = vld [vmem:[%s8] sm:$0x1]
          %v641 = vperm.slane %v639, 0
          %vm643 = vcmask 64512
          %v645 = vsel %vm643, %v635, 0
          %v648 = vsel %vm643, %v636, 0
          %v651 = vsel %vm643, %v637, 0
          %653 = vmatpush.msra.mxu0 0.0
          %654 = vmatpush.msra.mxu0 0.0
          %655 = vmatpush.msra.mxu0 0.0
          %656 = vmatpush.msra.mxu0 0.0
          %657 = vmatpush.msra.mxu0 0.0
          %658 = vmatpush.msra.mxu0 0.0
          %659 = vmatpush.msra.mxu0 0.0
          %660 = vmatpush.msra.mxu0 0.0
          %661 = vmatpush.msra.mxu0 0.0
          %662 = vmatpush.msra.mxu0 0.0
          %663 = vmatpush.msra.mxu0 0.0
          %664 = vmatpush.msra.mxu0 0.0
          %665 = vmatpush.msra.mxu0 0.0
          %666 = vmatpush.msra.mxu0 0.0
          %667 = vmatpush.msra.mxu0 0.0
          %668 = vmatpush.msra.mxu0 %v638
          %669 = vmatmul.f32.gmra.mxu0 %v645
          %v670 = vpop.f32.mrf.mxu0
          %v671 = vadd.f32 %v641, %v670
          %672 = vmatmul.f32.gmra.mxu0 %v648
          %v673 = vpop.f32.mrf.mxu0
          %v674 = vadd.f32 %v641, %v673
          %675 = vmatmul.f32.gmra.mxu0 %v651
          %v676 = vpop.f32.mrf.mxu0
          %v677 = vadd.f32 %v641, %v676
          %678 = vdwg.mxu0
          %v679 = vmax.f32 %v671, 0.0
          %v680 = vmax.f32 %v674, 0.0
          %v681 = vmax.f32 %v677, 0.0
          %vm682 = vcmask 130048
          %683 = vst.msk [vmem:[#allocation2] sm:$0xff] %vm682, %v679
          %684 = vst.msk [vmem:[#allocation2 + $0x8] sm:$0xff] %vm682, %v680
          %685 = vst.msk [vmem:[#allocation2 + $0x10] sm:$0xff] %vm682, %v681
          %686 = vst.msk [vmem:[#allocation3] sm:$0xff] %vm682, 0.0
          %687 = vst.msk [vmem:[#allocation3 + $0x8] sm:$0xff] %vm682, 0.0
          %688 = vst.msk [vmem:[#allocation3 + $0x10] sm:$0xff] %vm682, 0.0
        $region96: #{tpu_custom_call.1} parent=91 // pred_fallthru
          _
        %v689 = vld [vmem:[%s600] sm:$0xff]
        %v690 = vld [vmem:[%s600 + $0x8] sm:$0xff]
        %v691 = vld [vmem:[%s600 + $0x10] sm:$0xff]
        %v692 = vld [vmem:[%s600 + $0x18] sm:$0xff]
        %v693 = vld [vmem:[%s600 + $0x20] sm:$0xff]
        %v694 = vld [vmem:[%s600 + $0x28] sm:$0xff]
        %v695 = vld [vmem:[%s600 + $0x30] sm:$0xff]
        %v696 = vld [vmem:[%s600 + $0x38] sm:$0xff]
        %v697 = vld [vmem:[%s600 + $0x40] sm:$0xff]
        %v698 = vld [vmem:[%s600 + $0x48] sm:$0xff]
        %v699 = vld [vmem:[%s600 + $0x50] sm:$0xff]
        %v700 = vld [vmem:[%s600 + $0x58] sm:$0xff]
        %v701 = vld [vmem:[%s600 + $0x60] sm:$0xff]
        %v702 = vld [vmem:[%s600 + $0x68] sm:$0xff]
        %v703 = vld [vmem:[%s600 + $0x70] sm:$0xff]
        %v704 = vld [vmem:[%s600 + $0x78] sm:$0xff]
        %v705 = vld [vmem:[%s10] sm:$0xff]
        %v706 = vld [vmem:[%s11] sm:$0x1]
        %v708 = vperm.slane %v706, 0
        %vm710 = vcmask 64512
        %v712 = vsel %vm710, %v689, 0
        %v715 = vsel %vm710, %v690, 0
        %v718 = vsel %vm710, %v691, 0
        %v721 = vsel %vm710, %v692, 0
        %v724 = vsel %vm710, %v693, 0
        %v727 = vsel %vm710, %v694, 0
        %v730 = vsel %vm710, %v695, 0
        %v733 = vsel %vm710, %v696, 0
        %v736 = vsel %vm710, %v697, 0
        %v739 = vsel %vm710, %v698, 0
        %v742 = vsel %vm710, %v699, 0
        %v745 = vsel %vm710, %v700, 0
        %v748 = vsel %vm710, %v701, 0
        %v751 = vsel %vm710, %v702, 0
        %v754 = vsel %vm710, %v703, 0
        %v757 = vsel %vm710, %v704, 0
        %759 = vmatpush.msra.mxu0 0.0
        %760 = vmatpush.msra.mxu0 0.0
        %761 = vmatpush.msra.mxu0 0.0
        %762 = vmatpush.msra.mxu0 0.0
        %763 = vmatpush.msra.mxu0 0.0
        %764 = vmatpush.msra.mxu0 0.0
        %765 = vmatpush.msra.mxu0 0.0
        %766 = vmatpush.msra.mxu0 0.0
        %767 = vmatpush.msra.mxu0 0.0
        %768 = vmatpush.msra.mxu0 0.0
        %769 = vmatpush.msra.mxu0 0.0
        %770 = vmatpush.msra.mxu0 0.0
        %771 = vmatpush.msra.mxu0 0.0
        %772 = vmatpush.msra.mxu0 0.0
        %773 = vmatpush.msra.mxu0 0.0
        %774 = vmatpush.msra.mxu0 %v705
        %775 = vmatmul.f32.gmra.mxu0 %v712
        %v776 = vpop.f32.mrf.mxu0
        %v777 = vadd.f32 %v708, %v776
        %778 = vmatmul.f32.gmra.mxu0 %v715
        %v779 = vpop.f32.mrf.mxu0
        %v780 = vadd.f32 %v708, %v779
        %781 = vmatmul.f32.gmra.mxu0 %v718
        %v782 = vpop.f32.mrf.mxu0
        %v783 = vadd.f32 %v708, %v782
        %784 = vmatmul.f32.gmra.mxu0 %v721
        %v785 = vpop.f32.mrf.mxu0
        %v786 = vadd.f32 %v708, %v785
        %787 = vmatmul.f32.gmra.mxu0 %v724
        %v788 = vpop.f32.mrf.mxu0
        %v789 = vadd.f32 %v708, %v788
        %790 = vmatmul.f32.gmra.mxu0 %v727
        %v791 = vpop.f32.mrf.mxu0
        %v792 = vadd.f32 %v708, %v791
        %793 = vmatmul.f32.gmra.mxu0 %v730
        %v794 = vpop.f32.mrf.mxu0
        %v795 = vadd.f32 %v708, %v794
        %796 = vmatmul.f32.gmra.mxu0 %v733
        %v797 = vpop.f32.mrf.mxu0
        %v798 = vadd.f32 %v708, %v797
        %799 = vmatmul.f32.gmra.mxu0 %v736
        %v800 = vpop.f32.mrf.mxu0
        %v801 = vadd.f32 %v708, %v800
        %802 = vmatmul.f32.gmra.mxu0 %v739
        %v803 = vpop.f32.mrf.mxu0
        %v804 = vadd.f32 %v708, %v803
        %805 = vmatmul.f32.gmra.mxu0 %v742
        %v806 = vpop.f32.mrf.mxu0
        %v807 = vadd.f32 %v708, %v806
        %808 = vmatmul.f32.gmra.mxu0 %v745
        %v809 = vpop.f32.mrf.mxu0
        %v810 = vadd.f32 %v708, %v809
        %811 = vmatmul.f32.gmra.mxu0 %v748
        %v812 = vpop.f32.mrf.mxu0
        %v813 = vadd.f32 %v708, %v812
        %814 = vmatmul.f32.gmra.mxu0 %v751
        %v815 = vpop.f32.mrf.mxu0
        %v816 = vadd.f32 %v708, %v815
        %817 = vmatmul.f32.gmra.mxu0 %v754
        %v818 = vpop.f32.mrf.mxu0
        %v819 = vadd.f32 %v708, %v818
        %820 = vmatmul.f32.gmra.mxu0 %v757
        %v821 = vpop.f32.mrf.mxu0
        %v822 = vadd.f32 %v708, %v821
        %823 = vdwg.mxu0
        %v824 = vmax.f32 %v777, 0.0
        %v825 = vmax.f32 %v780, 0.0
        %v826 = vmax.f32 %v783, 0.0
        %v827 = vmax.f32 %v786, 0.0
        %v828 = vmax.f32 %v789, 0.0
        %v829 = vmax.f32 %v792, 0.0
        %v830 = vmax.f32 %v795, 0.0
        %v831 = vmax.f32 %v798, 0.0
        %v832 = vmax.f32 %v801, 0.0
        %v833 = vmax.f32 %v804, 0.0
        %v834 = vmax.f32 %v807, 0.0
        %v835 = vmax.f32 %v810, 0.0
        %v836 = vmax.f32 %v813, 0.0
        %v837 = vmax.f32 %v816, 0.0
        %v838 = vmax.f32 %v819, 0.0
        %v839 = vmax.f32 %v822, 0.0
        %v840 = vld [vmem:[%s12] sm:$0xff]
        %v841 = vld [vmem:[%s12 + $0x8] sm:$0xff]
        %v842 = vld [vmem:[%s12 + $0x10] sm:$0xff]
        %v843 = vld [vmem:[%s12 + $0x18] sm:$0xff]
        %v844 = vld [vmem:[%s12 + $0x20] sm:$0xff]
        %v845 = vld [vmem:[%s12 + $0x28] sm:$0xff]
        %v846 = vld [vmem:[%s12 + $0x30] sm:$0xff]
        %v847 = vld [vmem:[%s12 + $0x38] sm:$0xff]
        %v848 = vld [vmem:[%s12 + $0x40] sm:$0xff]
        %v849 = vld [vmem:[%s12 + $0x48] sm:$0xff]
        %v850 = vld [vmem:[%s12 + $0x50] sm:$0xff]
        %v851 = vld [vmem:[%s12 + $0x58] sm:$0xff]
        %v852 = vld [vmem:[%s13] sm:$0x7]
        %v854 = vperm.slane %v852, 0
        %v855 = vperm.slane %v852, 1
        %v856 = vperm.slane %v852, 2
        %vm860 = vcmask 261120
        %v862 = vsel %vm860, %v824, 0
        %v865 = vsel %vm860, %v825, 0
        %v868 = vsel %vm860, %v826, 0
        %v871 = vsel %vm860, %v827, 0
        %v874 = vsel %vm860, %v828, 0
        %v877 = vsel %vm860, %v829, 0
        %v880 = vsel %vm860, %v830, 0
        %v883 = vsel %vm860, %v831, 0
        %v886 = vsel %vm860, %v832, 0
        %v889 = vsel %vm860, %v833, 0
        %v892 = vsel %vm860, %v834, 0
        %v895 = vsel %vm860, %v835, 0
        %v898 = vsel %vm860, %v836, 0
        %v901 = vsel %vm860, %v837, 0
        %v904 = vsel %vm860, %v838, 0
        %v907 = vsel %vm860, %v839, 0
        %909 = vmatpush.msra.mxu0 0.0
        %910 = vmatpush.msra.mxu0 0.0
        %911 = vmatpush.msra.mxu0 0.0
        %912 = vmatpush.msra.mxu0 0.0
        %913 = vmatpush.msra.mxu0 0.0
        %914 = vmatpush.msra.mxu0 0.0
        %915 = vmatpush.msra.mxu0 0.0
        %916 = vmatpush.msra.mxu0 0.0
        %917 = vmatpush.msra.mxu0 0.0
        %918 = vmatpush.msra.mxu0 0.0
        %919 = vmatpush.msra.mxu0 0.0
        %920 = vmatpush.msra.mxu0 0.0
        %921 = vmatpush.msra.mxu0 %v849
        %922 = vmatpush.msra.mxu0 %v846
        %923 = vmatpush.msra.mxu0 %v843
        %924 = vmatpush.msra.mxu0 %v840
        %925 = vmatmul.f32.gmra.mxu0 %v862
        %v926 = vpop.f32.mrf.mxu0
        %v927 = vadd.f32 %v854, %v926
        %928 = vmatmul.f32.gmra.mxu0 %v865
        %v929 = vpop.f32.mrf.mxu0
        %v930 = vadd.f32 %v854, %v929
        %931 = vmatmul.f32.gmra.mxu0 %v868
        %v932 = vpop.f32.mrf.mxu0
        %v933 = vadd.f32 %v854, %v932
        %934 = vmatmul.f32.gmra.mxu0 %v871
        %v935 = vpop.f32.mrf.mxu0
        %v936 = vadd.f32 %v854, %v935
        %937 = vmatmul.f32.gmra.mxu0 %v874
        %v938 = vpop.f32.mrf.mxu0
        %v939 = vadd.f32 %v854, %v938
        %940 = vmatmul.f32.gmra.mxu0 %v877
        %v941 = vpop.f32.mrf.mxu0
        %v942 = vadd.f32 %v854, %v941
        %943 = vmatmul.f32.gmra.mxu0 %v880
        %v944 = vpop.f32.mrf.mxu0
        %v945 = vadd.f32 %v854, %v944
        %946 = vmatmul.f32.gmra.mxu0 %v883
        %v947 = vpop.f32.mrf.mxu0
        %v948 = vadd.f32 %v854, %v947
        %949 = vmatmul.f32.gmra.mxu0 %v886
        %v950 = vpop.f32.mrf.mxu0
        %v951 = vadd.f32 %v854, %v950
        %952 = vmatmul.f32.gmra.mxu0 %v889
        %v953 = vpop.f32.mrf.mxu0
        %v954 = vadd.f32 %v854, %v953
        %955 = vmatmul.f32.gmra.mxu0 %v892
        %v956 = vpop.f32.mrf.mxu0
        %v957 = vadd.f32 %v854, %v956
        %958 = vmatmul.f32.gmra.mxu0 %v895
        %v959 = vpop.f32.mrf.mxu0
        %v960 = vadd.f32 %v854, %v959
        %961 = vmatmul.f32.gmra.mxu0 %v898
        %v962 = vpop.f32.mrf.mxu0
        %v963 = vadd.f32 %v854, %v962
        %964 = vmatmul.f32.gmra.mxu0 %v901
        %v965 = vpop.f32.mrf.mxu0
        %v966 = vadd.f32 %v854, %v965
        %967 = vmatmul.f32.gmra.mxu0 %v904
        %v968 = vpop.f32.mrf.mxu0
        %v969 = vadd.f32 %v854, %v968
        %970 = vmatmul.f32.gmra.mxu0 %v907
        %v971 = vpop.f32.mrf.mxu0
        %v972 = vadd.f32 %v854, %v971
        %973 = vdwg.mxu0
        %974 = vmatpush.msra.mxu0 0.0
        %975 = vmatpush.msra.mxu0 0.0
        %976 = vmatpush.msra.mxu0 0.0
        %977 = vmatpush.msra.mxu0 0.0
        %978 = vmatpush.msra.mxu0 0.0
        %979 = vmatpush.msra.mxu0 0.0
        %980 = vmatpush.msra.mxu0 0.0
        %981 = vmatpush.msra.mxu0 0.0
        %982 = vmatpush.msra.mxu0 0.0
        %983 = vmatpush.msra.mxu0 0.0
        %984 = vmatpush.msra.mxu0 0.0
        %985 = vmatpush.msra.mxu0 0.0
        %986 = vmatpush.msra.mxu0 %v850
        %987 = vmatpush.msra.mxu0 %v847
        %988 = vmatpush.msra.mxu0 %v844
        %989 = vmatpush.msra.mxu0 %v841
        %990 = vmatmul.f32.gmra.mxu0 %v862
        %v991 = vpop.f32.mrf.mxu0
        %v992 = vadd.f32 %v855, %v991
        %993 = vmatmul.f32.gmra.mxu0 %v865
        %v994 = vpop.f32.mrf.mxu0
        %v995 = vadd.f32 %v855, %v994
        %996 = vmatmul.f32.gmra.mxu0 %v868
        %v997 = vpop.f32.mrf.mxu0
        %v998 = vadd.f32 %v855, %v997
        %999 = vmatmul.f32.gmra.mxu0 %v871
        %v1000 = vpop.f32.mrf.mxu0
        %v1001 = vadd.f32 %v855, %v1000
        %1002 = vmatmul.f32.gmra.mxu0 %v874
        %v1003 = vpop.f32.mrf.mxu0
        %v1004 = vadd.f32 %v855, %v1003
        %1005 = vmatmul.f32.gmra.mxu0 %v877
        %v1006 = vpop.f32.mrf.mxu0
        %v1007 = vadd.f32 %v855, %v1006
        %1008 = vmatmul.f32.gmra.mxu0 %v880
        %v1009 = vpop.f32.mrf.mxu0
        %v1010 = vadd.f32 %v855, %v1009
        %1011 = vmatmul.f32.gmra.mxu0 %v883
        %v1012 = vpop.f32.mrf.mxu0
        %v1013 = vadd.f32 %v855, %v1012
        %1014 = vmatmul.f32.gmra.mxu0 %v886
        %v1015 = vpop.f32.mrf.mxu0
        %v1016 = vadd.f32 %v855, %v1015
        %1017 = vmatmul.f32.gmra.mxu0 %v889
        %v1018 = vpop.f32.mrf.mxu0
        %v1019 = vadd.f32 %v855, %v1018
        %1020 = vmatmul.f32.gmra.mxu0 %v892
        %v1021 = vpop.f32.mrf.mxu0
        %v1022 = vadd.f32 %v855, %v1021
        %1023 = vmatmul.f32.gmra.mxu0 %v895
        %v1024 = vpop.f32.mrf.mxu0
        %v1025 = vadd.f32 %v855, %v1024
        %1026 = vmatmul.f32.gmra.mxu0 %v898
        %v1027 = vpop.f32.mrf.mxu0
        %v1028 = vadd.f32 %v855, %v1027
        %1029 = vmatmul.f32.gmra.mxu0 %v901
        %v1030 = vpop.f32.mrf.mxu0
        %v1031 = vadd.f32 %v855, %v1030
        %1032 = vmatmul.f32.gmra.mxu0 %v904
        %v1033 = vpop.f32.mrf.mxu0
        %v1034 = vadd.f32 %v855, %v1033
        %1035 = vmatmul.f32.gmra.mxu0 %v907
        %v1036 = vpop.f32.mrf.mxu0
        %v1037 = vadd.f32 %v855, %v1036
        %1038 = vdwg.mxu0
        %1039 = vmatpush.msra.mxu0 0.0
        %1040 = vmatpush.msra.mxu0 0.0
        %1041 = vmatpush.msra.mxu0 0.0
        %1042 = vmatpush.msra.mxu0 0.0
        %1043 = vmatpush.msra.mxu0 0.0
        %1044 = vmatpush.msra.mxu0 0.0
        %1045 = vmatpush.msra.mxu0 0.0
        %1046 = vmatpush.msra.mxu0 0.0
        %1047 = vmatpush.msra.mxu0 0.0
        %1048 = vmatpush.msra.mxu0 0.0
        %1049 = vmatpush.msra.mxu0 0.0
        %1050 = vmatpush.msra.mxu0 0.0
        %1051 = vmatpush.msra.mxu0 %v851
        %1052 = vmatpush.msra.mxu0 %v848
        %1053 = vmatpush.msra.mxu0 %v845
        %1054 = vmatpush.msra.mxu0 %v842
        %1055 = vmatmul.f32.gmra.mxu0 %v862
        %v1056 = vpop.f32.mrf.mxu0
        %v1057 = vadd.f32 %v856, %v1056
        %1058 = vmatmul.f32.gmra.mxu0 %v865
        %v1059 = vpop.f32.mrf.mxu0
        %v1060 = vadd.f32 %v856, %v1059
        %1061 = vmatmul.f32.gmra.mxu0 %v868
        %v1062 = vpop.f32.mrf.mxu0
        %v1063 = vadd.f32 %v856, %v1062
        %1064 = vmatmul.f32.gmra.mxu0 %v871
        %v1065 = vpop.f32.mrf.mxu0
        %v1066 = vadd.f32 %v856, %v1065
        %1067 = vmatmul.f32.gmra.mxu0 %v874
        %v1068 = vpop.f32.mrf.mxu0
        %v1069 = vadd.f32 %v856, %v1068
        %1070 = vmatmul.f32.gmra.mxu0 %v877
        %v1071 = vpop.f32.mrf.mxu0
        %v1072 = vadd.f32 %v856, %v1071
        %1073 = vmatmul.f32.gmra.mxu0 %v880
        %v1074 = vpop.f32.mrf.mxu0
        %v1075 = vadd.f32 %v856, %v1074
        %1076 = vmatmul.f32.gmra.mxu0 %v883
        %v1077 = vpop.f32.mrf.mxu0
        %v1078 = vadd.f32 %v856, %v1077
        %1079 = vmatmul.f32.gmra.mxu0 %v886
        %v1080 = vpop.f32.mrf.mxu0
        %v1081 = vadd.f32 %v856, %v1080
        %1082 = vmatmul.f32.gmra.mxu0 %v889
        %v1083 = vpop.f32.mrf.mxu0
        %v1084 = vadd.f32 %v856, %v1083
        %1085 = vmatmul.f32.gmra.mxu0 %v892
        %v1086 = vpop.f32.mrf.mxu0
        %v1087 = vadd.f32 %v856, %v1086
        %1088 = vmatmul.f32.gmra.mxu0 %v895
        %v1089 = vpop.f32.mrf.mxu0
        %v1090 = vadd.f32 %v856, %v1089
        %1091 = vmatmul.f32.gmra.mxu0 %v898
        %v1092 = vpop.f32.mrf.mxu0
        %v1093 = vadd.f32 %v856, %v1092
        %1094 = vmatmul.f32.gmra.mxu0 %v901
        %v1095 = vpop.f32.mrf.mxu0
        %v1096 = vadd.f32 %v856, %v1095
        %1097 = vmatmul.f32.gmra.mxu0 %v904
        %v1098 = vpop.f32.mrf.mxu0
        %v1099 = vadd.f32 %v856, %v1098
        %1100 = vmatmul.f32.gmra.mxu0 %v907
        %v1101 = vpop.f32.mrf.mxu0
        %v1102 = vadd.f32 %v856, %v1101
        %1103 = vdwg.mxu0
        %v1104 = vlaneseq
        %v1105 = vand.u32 %v1104, 127
        %v1106 = vld [vmem:[%s609] sm:$0xff]
        %v1107 = vld [vmem:[%s609 + $0x8] sm:$0xff]
        %v1108 = vld [vmem:[%s609 + $0x10] sm:$0xff]
        %v1109 = vld [vmem:[%s609 + $0x18] sm:$0xff]
        %v1110 = vld [vmem:[%s609 + $0x20] sm:$0xff]
        %v1111 = vld [vmem:[%s609 + $0x28] sm:$0xff]
        %v1112 = vld [vmem:[%s609 + $0x30] sm:$0xff]
        %v1113 = vld [vmem:[%s609 + $0x38] sm:$0xff]
        %v1114 = vld [vmem:[%s609 + $0x40] sm:$0xff]
        %v1115 = vld [vmem:[%s609 + $0x48] sm:$0xff]
        %v1116 = vld [vmem:[%s609 + $0x50] sm:$0xff]
        %v1117 = vld [vmem:[%s609 + $0x58] sm:$0xff]
        %v1118 = vld [vmem:[%s609 + $0x60] sm:$0xff]
        %v1119 = vld [vmem:[%s609 + $0x68] sm:$0xff]
        %v1120 = vld [vmem:[%s609 + $0x70] sm:$0xff]
        %v1121 = vld [vmem:[%s609 + $0x78] sm:$0xff]
        %1122 = vset.pattern.permute.xlu0 0
        %1123 = vperm.xlu0 %1122, %v1106
        %v1124 = vpop.permute.xlu0 %1123
        %1125 = vset.pattern.permute.xlu0 0
        %1126 = vperm.xlu0 %1125, %v1107
        %v1127 = vpop.permute.xlu0 %1126
        %1128 = vset.pattern.permute.xlu0 0
        %1129 = vperm.xlu0 %1128, %v1108
        %v1130 = vpop.permute.xlu0 %1129
        %1131 = vset.pattern.permute.xlu0 0
        %1132 = vperm.xlu0 %1131, %v1109
        %v1133 = vpop.permute.xlu0 %1132
        %1134 = vset.pattern.permute.xlu0 0
        %1135 = vperm.xlu0 %1134, %v1110
        %v1136 = vpop.permute.xlu0 %1135
        %1137 = vset.pattern.permute.xlu0 0
        %1138 = vperm.xlu0 %1137, %v1111
        %v1139 = vpop.permute.xlu0 %1138
        %1140 = vset.pattern.permute.xlu0 0
        %1141 = vperm.xlu0 %1140, %v1112
        %v1142 = vpop.permute.xlu0 %1141
        %1143 = vset.pattern.permute.xlu0 0
        %1144 = vperm.xlu0 %1143, %v1113
        %v1145 = vpop.permute.xlu0 %1144
        %1146 = vset.pattern.permute.xlu0 0
        %1147 = vperm.xlu0 %1146, %v1114
        %v1148 = vpop.permute.xlu0 %1147
        %1149 = vset.pattern.permute.xlu0 0
        %1150 = vperm.xlu0 %1149, %v1115
        %v1151 = vpop.permute.xlu0 %1150
        %1152 = vset.pattern.permute.xlu0 0
        %1153 = vperm.xlu0 %1152, %v1116
        %v1154 = vpop.permute.xlu0 %1153
        %1155 = vset.pattern.permute.xlu0 0
        %1156 = vperm.xlu0 %1155, %v1117
        %v1157 = vpop.permute.xlu0 %1156
        %1158 = vset.pattern.permute.xlu0 0
        %1159 = vperm.xlu0 %1158, %v1118
        %v1160 = vpop.permute.xlu0 %1159
        %1161 = vset.pattern.permute.xlu0 0
        %1162 = vperm.xlu0 %1161, %v1119
        %v1163 = vpop.permute.xlu0 %1162
        %1164 = vset.pattern.permute.xlu0 0
        %1165 = vperm.xlu0 %1164, %v1120
        %v1166 = vpop.permute.xlu0 %1165
        %1167 = vset.pattern.permute.xlu0 0
        %1168 = vperm.xlu0 %1167, %v1121
        %v1169 = vpop.permute.xlu0 %1168
        %vm1170 = vcmp.eq.s32.totalorder %v1105, %v1124
        %vm1171 = vcmp.eq.s32.totalorder %v1105, %v1127
        %vm1172 = vcmp.eq.s32.totalorder %v1105, %v1130
        %vm1173 = vcmp.eq.s32.totalorder %v1105, %v1133
        %vm1174 = vcmp.eq.s32.totalorder %v1105, %v1136
        %vm1175 = vcmp.eq.s32.totalorder %v1105, %v1139
        %vm1176 = vcmp.eq.s32.totalorder %v1105, %v1142
        %vm1177 = vcmp.eq.s32.totalorder %v1105, %v1145
        %vm1178 = vcmp.eq.s32.totalorder %v1105, %v1148
        %vm1179 = vcmp.eq.s32.totalorder %v1105, %v1151
        %vm1180 = vcmp.eq.s32.totalorder %v1105, %v1154
        %vm1181 = vcmp.eq.s32.totalorder %v1105, %v1157
        %vm1182 = vcmp.eq.s32.totalorder %v1105, %v1160
        %vm1183 = vcmp.eq.s32.totalorder %v1105, %v1163
        %vm1184 = vcmp.eq.s32.totalorder %v1105, %v1166
        %vm1185 = vcmp.eq.s32.totalorder %v1105, %v1169
        %v1186 = vsel %vm1170, 1, 0
        %v1187 = vsel %vm1171, 1, 0
        %v1188 = vsel %vm1172, 1, 0
        %v1189 = vsel %vm1173, 1, 0
        %v1190 = vsel %vm1174, 1, 0
        %v1191 = vsel %vm1175, 1, 0
        %v1192 = vsel %vm1176, 1, 0
        %v1193 = vsel %vm1177, 1, 0
        %v1194 = vsel %vm1178, 1, 0
        %v1195 = vsel %vm1179, 1, 0
        %v1196 = vsel %vm1180, 1, 0
        %v1197 = vsel %vm1181, 1, 0
        %v1198 = vsel %vm1182, 1, 0
        %v1199 = vsel %vm1183, 1, 0
        %v1200 = vsel %vm1184, 1, 0
        %v1201 = vsel %vm1185, 1, 0
        %v1202 = vcvt.s32.f32 %v1186
        %v1203 = vcvt.s32.f32 %v1187
        %v1204 = vcvt.s32.f32 %v1188
        %v1205 = vcvt.s32.f32 %v1189
        %v1206 = vcvt.s32.f32 %v1190
        %v1207 = vcvt.s32.f32 %v1191
        %v1208 = vcvt.s32.f32 %v1192
        %v1209 = vcvt.s32.f32 %v1193
        %v1210 = vcvt.s32.f32 %v1194
        %v1211 = vcvt.s32.f32 %v1195
        %v1212 = vcvt.s32.f32 %v1196
        %v1213 = vcvt.s32.f32 %v1197
        %v1214 = vcvt.s32.f32 %v1198
        %v1215 = vcvt.s32.f32 %v1199
        %v1216 = vcvt.s32.f32 %v1200
        %v1217 = vcvt.s32.f32 %v1201
        %v1218 = vld [vmem:[#allocation2] sm:$0xff]
        %v1219 = vld [vmem:[#allocation2 + $0x8] sm:$0xff]
        %v1220 = vld [vmem:[#allocation2 + $0x10] sm:$0xff]
        %vm1221 = vcmask 195584
        %v1223 = vsel %vm1221, %v1202, 0
        %v1226 = vsel %vm1221, %v1203, 0
        %v1229 = vsel %vm1221, %v1204, 0
        %v1232 = vsel %vm1221, %v1205, 0
        %v1235 = vsel %vm1221, %v1206, 0
        %v1238 = vsel %vm1221, %v1207, 0
        %v1241 = vsel %vm1221, %v1208, 0
        %v1244 = vsel %vm1221, %v1209, 0
        %v1247 = vsel %vm1221, %v1210, 0
        %v1250 = vsel %vm1221, %v1211, 0
        %v1253 = vsel %vm1221, %v1212, 0
        %v1256 = vsel %vm1221, %v1213, 0
        %v1259 = vsel %vm1221, %v1214, 0
        %v1262 = vsel %vm1221, %v1215, 0
        %v1265 = vsel %vm1221, %v1216, 0
        %v1268 = vsel %vm1221, %v1217, 0
        %1270 = vmatpush.msra.mxu0 0.0
        %1271 = vmatpush.msra.mxu0 0.0
        %1272 = vmatpush.msra.mxu0 0.0
        %1273 = vmatpush.msra.mxu0 0.0
        %1274 = vmatpush.msra.mxu0 0.0
        %1275 = vmatpush.msra.mxu0 0.0
        %1276 = vmatpush.msra.mxu0 0.0
        %1277 = vmatpush.msra.mxu0 0.0
        %1278 = vmatpush.msra.mxu0 0.0
        %1279 = vmatpush.msra.mxu0 0.0
        %1280 = vmatpush.msra.mxu0 0.0
        %1281 = vmatpush.msra.mxu0 0.0
        %1282 = vmatpush.msra.mxu0 0.0
        %1283 = vmatpush.msra.mxu0 %v1220
        %1284 = vmatpush.msra.mxu0 %v1219
        %1285 = vmatpush.msra.mxu0 %v1218
        %1286 = vmatmul.f32.gmra.mxu0 %v1223
        %v1287 = vpop.f32.mrf.mxu0
        %v1288 = vadd.f32 0.0, %v1287
        %1289 = vmatmul.f32.gmra.mxu0 %v1226
        %v1290 = vpop.f32.mrf.mxu0
        %v1291 = vadd.f32 0.0, %v1290
        %1292 = vmatmul.f32.gmra.mxu0 %v1229
        %v1293 = vpop.f32.mrf.mxu0
        %v1294 = vadd.f32 0.0, %v1293
        %1295 = vmatmul.f32.gmra.mxu0 %v1232
        %v1296 = vpop.f32.mrf.mxu0
        %v1297 = vadd.f32 0.0, %v1296
        %1298 = vmatmul.f32.gmra.mxu0 %v1235
        %v1299 = vpop.f32.mrf.mxu0
        %v1300 = vadd.f32 0.0, %v1299
        %1301 = vmatmul.f32.gmra.mxu0 %v1238
        %v1302 = vpop.f32.mrf.mxu0
        %v1303 = vadd.f32 0.0, %v1302
        %1304 = vmatmul.f32.gmra.mxu0 %v1241
        %v1305 = vpop.f32.mrf.mxu0
        %v1306 = vadd.f32 0.0, %v1305
        %1307 = vmatmul.f32.gmra.mxu0 %v1244
        %v1308 = vpop.f32.mrf.mxu0
        %v1309 = vadd.f32 0.0, %v1308
        %1310 = vmatmul.f32.gmra.mxu0 %v1247
        %v1311 = vpop.f32.mrf.mxu0
        %v1312 = vadd.f32 0.0, %v1311
        %1313 = vmatmul.f32.gmra.mxu0 %v1250
        %v1314 = vpop.f32.mrf.mxu0
        %v1315 = vadd.f32 0.0, %v1314
        %1316 = vmatmul.f32.gmra.mxu0 %v1253
        %v1317 = vpop.f32.mrf.mxu0
        %v1318 = vadd.f32 0.0, %v1317
        %1319 = vmatmul.f32.gmra.mxu0 %v1256
        %v1320 = vpop.f32.mrf.mxu0
        %v1321 = vadd.f32 0.0, %v1320
        %1322 = vmatmul.f32.gmra.mxu0 %v1259
        %v1323 = vpop.f32.mrf.mxu0
        %v1324 = vadd.f32 0.0, %v1323
        %1325 = vmatmul.f32.gmra.mxu0 %v1262
        %v1326 = vpop.f32.mrf.mxu0
        %v1327 = vadd.f32 0.0, %v1326
        %1328 = vmatmul.f32.gmra.mxu0 %v1265
        %v1329 = vpop.f32.mrf.mxu0
        %v1330 = vadd.f32 0.0, %v1329
        %1331 = vmatmul.f32.gmra.mxu0 %v1268
        %v1332 = vpop.f32.mrf.mxu0
        %v1333 = vadd.f32 0.0, %v1332
        %1334 = vdwg.mxu0
        %v1335 = vld [vmem:[%s9] sm:$0xff]
        %v1336 = vld [vmem:[%s9 + $0x8] sm:$0xff]
        %v1337 = vld [vmem:[%s9 + $0x10] sm:$0xff]
        %v1338 = vld [vmem:[%s9 + $0x18] sm:$0xff]
        %vm1339 = vcmask 130048
        %v1341 = vsel %vm1339, %v1288, 0
        %v1344 = vsel %vm1339, %v1291, 0
        %v1347 = vsel %vm1339, %v1294, 0
        %v1350 = vsel %vm1339, %v1297, 0
        %v1353 = vsel %vm1339, %v1300, 0
        %v1356 = vsel %vm1339, %v1303, 0
        %v1359 = vsel %vm1339, %v1306, 0
        %v1362 = vsel %vm1339, %v1309, 0
        %v1365 = vsel %vm1339, %v1312, 0
        %v1368 = vsel %vm1339, %v1315, 0
        %v1371 = vsel %vm1339, %v1318, 0
        %v1374 = vsel %vm1339, %v1321, 0
        %v1377 = vsel %vm1339, %v1324, 0
        %v1380 = vsel %vm1339, %v1327, 0
        %v1383 = vsel %vm1339, %v1330, 0
        %v1386 = vsel %vm1339, %v1333, 0
        %1388 = vmatpush.msra.mxu0 0.0
        %1389 = vmatpush.msra.mxu0 0.0
        %1390 = vmatpush.msra.mxu0 0.0
        %1391 = vmatpush.msra.mxu0 0.0
        %1392 = vmatpush.msra.mxu0 0.0
        %1393 = vmatpush.msra.mxu0 0.0
        %1394 = vmatpush.msra.mxu0 0.0
        %1395 = vmatpush.msra.mxu0 0.0
        %1396 = vmatpush.msra.mxu0 0.0
        %1397 = vmatpush.msra.mxu0 0.0
        %1398 = vmatpush.msra.mxu0 0.0
        %1399 = vmatpush.msra.mxu0 0.0
        %1400 = vmatpush.msra.mxu0 0.0
        %1401 = vmatpush.msra.mxu0 0.0
        %1402 = vmatpush.msra.mxu0 %v1337
        %1403 = vmatpush.msra.mxu0 %v1335
        %1404 = vmatmul.f32.gmra.mxu0 %v1341
        %v1405 = vpop.f32.mrf.mxu0
        %v1406 = vadd.f32 0.0, %v1405
        %1407 = vmatmul.f32.gmra.mxu0 %v1344
        %v1408 = vpop.f32.mrf.mxu0
        %v1409 = vadd.f32 0.0, %v1408
        %1410 = vmatmul.f32.gmra.mxu0 %v1347
        %v1411 = vpop.f32.mrf.mxu0
        %v1412 = vadd.f32 0.0, %v1411
        %1413 = vmatmul.f32.gmra.mxu0 %v1350
        %v1414 = vpop.f32.mrf.mxu0
        %v1415 = vadd.f32 0.0, %v1414
        %1416 = vmatmul.f32.gmra.mxu0 %v1353
        %v1417 = vpop.f32.mrf.mxu0
        %v1418 = vadd.f32 0.0, %v1417
        %1419 = vmatmul.f32.gmra.mxu0 %v1356
        %v1420 = vpop.f32.mrf.mxu0
        %v1421 = vadd.f32 0.0, %v1420
        %1422 = vmatmul.f32.gmra.mxu0 %v1359
        %v1423 = vpop.f32.mrf.mxu0
        %v1424 = vadd.f32 0.0, %v1423
        %1425 = vmatmul.f32.gmra.mxu0 %v1362
        %v1426 = vpop.f32.mrf.mxu0
        %v1427 = vadd.f32 0.0, %v1426
        %1428 = vmatmul.f32.gmra.mxu0 %v1365
        %v1429 = vpop.f32.mrf.mxu0
        %v1430 = vadd.f32 0.0, %v1429
        %1431 = vmatmul.f32.gmra.mxu0 %v1368
        %v1432 = vpop.f32.mrf.mxu0
        %v1433 = vadd.f32 0.0, %v1432
        %1434 = vmatmul.f32.gmra.mxu0 %v1371
        %v1435 = vpop.f32.mrf.mxu0
        %v1436 = vadd.f32 0.0, %v1435
        %1437 = vmatmul.f32.gmra.mxu0 %v1374
        %v1438 = vpop.f32.mrf.mxu0
        %v1439 = vadd.f32 0.0, %v1438
        %1440 = vmatmul.f32.gmra.mxu0 %v1377
        %v1441 = vpop.f32.mrf.mxu0
        %v1442 = vadd.f32 0.0, %v1441
        %1443 = vmatmul.f32.gmra.mxu0 %v1380
        %v1444 = vpop.f32.mrf.mxu0
        %v1445 = vadd.f32 0.0, %v1444
        %1446 = vmatmul.f32.gmra.mxu0 %v1383
        %v1447 = vpop.f32.mrf.mxu0
        %v1448 = vadd.f32 0.0, %v1447
        %1449 = vmatmul.f32.gmra.mxu0 %v1386
        %v1450 = vpop.f32.mrf.mxu0
        %v1451 = vadd.f32 0.0, %v1450
        %1452 = vdwg.mxu0
        %1453 = vmatpush.msra.mxu0 0.0
        %1454 = vmatpush.msra.mxu0 0.0
        %1455 = vmatpush.msra.mxu0 0.0
        %1456 = vmatpush.msra.mxu0 0.0
        %1457 = vmatpush.msra.mxu0 0.0
        %1458 = vmatpush.msra.mxu0 0.0
        %1459 = vmatpush.msra.mxu0 0.0
        %1460 = vmatpush.msra.mxu0 0.0
        %1461 = vmatpush.msra.mxu0 0.0
        %1462 = vmatpush.msra.mxu0 0.0
        %1463 = vmatpush.msra.mxu0 0.0
        %1464 = vmatpush.msra.mxu0 0.0
        %1465 = vmatpush.msra.mxu0 0.0
        %1466 = vmatpush.msra.mxu0 0.0
        %1467 = vmatpush.msra.mxu0 %v1338
        %1468 = vmatpush.msra.mxu0 %v1336
        %1469 = vmatmul.f32.gmra.mxu0 %v1341
        %v1470 = vpop.f32.mrf.mxu0
        %v1471 = vadd.f32 0.0, %v1470
        %1472 = vmatmul.f32.gmra.mxu0 %v1344
        %v1473 = vpop.f32.mrf.mxu0
        %v1474 = vadd.f32 0.0, %v1473
        %1475 = vmatmul.f32.gmra.mxu0 %v1347
        %v1476 = vpop.f32.mrf.mxu0
        %v1477 = vadd.f32 0.0, %v1476
        %1478 = vmatmul.f32.gmra.mxu0 %v1350
        %v1479 = vpop.f32.mrf.mxu0
        %v1480 = vadd.f32 0.0, %v1479
        %1481 = vmatmul.f32.gmra.mxu0 %v1353
        %v1482 = vpop.f32.mrf.mxu0
        %v1483 = vadd.f32 0.0, %v1482
        %1484 = vmatmul.f32.gmra.mxu0 %v1356
        %v1485 = vpop.f32.mrf.mxu0
        %v1486 = vadd.f32 0.0, %v1485
        %1487 = vmatmul.f32.gmra.mxu0 %v1359
        %v1488 = vpop.f32.mrf.mxu0
        %v1489 = vadd.f32 0.0, %v1488
        %1490 = vmatmul.f32.gmra.mxu0 %v1362
        %v1491 = vpop.f32.mrf.mxu0
        %v1492 = vadd.f32 0.0, %v1491
        %1493 = vmatmul.f32.gmra.mxu0 %v1365
        %v1494 = vpop.f32.mrf.mxu0
        %v1495 = vadd.f32 0.0, %v1494
        %1496 = vmatmul.f32.gmra.mxu0 %v1368
        %v1497 = vpop.f32.mrf.mxu0
        %v1498 = vadd.f32 0.0, %v1497
        %1499 = vmatmul.f32.gmra.mxu0 %v1371
        %v1500 = vpop.f32.mrf.mxu0
        %v1501 = vadd.f32 0.0, %v1500
        %1502 = vmatmul.f32.gmra.mxu0 %v1374
        %v1503 = vpop.f32.mrf.mxu0
        %v1504 = vadd.f32 0.0, %v1503
        %1505 = vmatmul.f32.gmra.mxu0 %v1377
        %v1506 = vpop.f32.mrf.mxu0
        %v1507 = vadd.f32 0.0, %v1506
        %1508 = vmatmul.f32.gmra.mxu0 %v1380
        %v1509 = vpop.f32.mrf.mxu0
        %v1510 = vadd.f32 0.0, %v1509
        %1511 = vmatmul.f32.gmra.mxu0 %v1383
        %v1512 = vpop.f32.mrf.mxu0
        %v1513 = vadd.f32 0.0, %v1512
        %1514 = vmatmul.f32.gmra.mxu0 %v1386
        %v1515 = vpop.f32.mrf.mxu0
        %v1516 = vadd.f32 0.0, %v1515
        %1517 = vdwg.mxu0
        %v1518 = vmul.f32 %v927, %v1406
        %v1519 = vmul.f32 %v992, %v1471
        %v1520 = vmul.f32 %v930, %v1409
        %v1521 = vmul.f32 %v995, %v1474
        %v1522 = vmul.f32 %v933, %v1412
        %v1523 = vmul.f32 %v998, %v1477
        %v1524 = vmul.f32 %v936, %v1415
        %v1525 = vmul.f32 %v1001, %v1480
        %v1526 = vmul.f32 %v939, %v1418
        %v1527 = vmul.f32 %v1004, %v1483
        %v1528 = vmul.f32 %v942, %v1421
        %v1529 = vmul.f32 %v1007, %v1486
        %v1530 = vmul.f32 %v945, %v1424
        %v1531 = vmul.f32 %v1010, %v1489
        %v1532 = vmul.f32 %v948, %v1427
        %v1533 = vmul.f32 %v1013, %v1492
        %v1534 = vmul.f32 %v951, %v1430
        %v1535 = vmul.f32 %v1016, %v1495
        %v1536 = vmul.f32 %v954, %v1433
        %v1537 = vmul.f32 %v1019, %v1498
        %v1538 = vmul.f32 %v957, %v1436
        %v1539 = vmul.f32 %v1022, %v1501
        %v1540 = vmul.f32 %v960, %v1439
        %v1541 = vmul.f32 %v1025, %v1504
        %v1542 = vmul.f32 %v963, %v1442
        %v1543 = vmul.f32 %v1028, %v1507
        %v1544 = vmul.f32 %v966, %v1445
        %v1545 = vmul.f32 %v1031, %v1510
        %v1546 = vmul.f32 %v969, %v1448
        %v1547 = vmul.f32 %v1034, %v1513
        %v1548 = vmul.f32 %v972, %v1451
        %v1549 = vmul.f32 %v1037, %v1516
        %v1550 = vld [vmem:[%s14] sm:$0xff]
        %v1551 = vld [vmem:[%s14 + $0x8] sm:$0xff]
        %v1552 = vld [vmem:[%s14 + $0x10] sm:$0xff]
        %v1553 = vld [vmem:[%s14 + $0x18] sm:$0xff]
        %v1554 = vld [vmem:[%s14 + $0x20] sm:$0xff]
        %v1555 = vld [vmem:[%s14 + $0x28] sm:$0xff]
        %v1556 = vld [vmem:[%s14 + $0x30] sm:$0xff]
        %v1557 = vld [vmem:[%s14 + $0x38] sm:$0xff]
        %v1558 = vld [vmem:[%s14 + $0x40] sm:$0xff]
        %v1559 = vld [vmem:[%s14 + $0x48] sm:$0xff]
        %v1560 = vld [vmem:[%s14 + $0x50] sm:$0xff]
        %v1561 = vld [vmem:[%s14 + $0x58] sm:$0xff]
        %v1562 = vld [vmem:[%s14 + $0x60] sm:$0xff]
        %v1563 = vld [vmem:[%s14 + $0x68] sm:$0xff]
        %v1564 = vld [vmem:[%s14 + $0x70] sm:$0xff]
        %v1565 = vld [vmem:[%s14 + $0x78] sm:$0xff]
        %v1566 = vld [vmem:[%s14 + $0x80] sm:$0xff]
        %v1567 = vld [vmem:[%s14 + $0x88] sm:$0xff]
        %v1568 = vld [vmem:[%s14 + $0x90] sm:$0xff]
        %v1569 = vld [vmem:[%s14 + $0x98] sm:$0xff]
        %v1570 = vld [vmem:[%s14 + $0xa0] sm:$0xff]
        %v1571 = vld [vmem:[%s14 + $0xa8] sm:$0xff]
        %v1572 = vld [vmem:[%s14 + $0xb0] sm:$0xff]
        %v1573 = vld [vmem:[%s14 + $0xb8] sm:$0xff]
        %v1574 = vld [vmem:[%s14 + $0xc0] sm:$0xff]
        %v1575 = vld [vmem:[%s14 + $0xc8] sm:$0xff]
        %v1576 = vld [vmem:[%s14 + $0xd0] sm:$0xff]
        %v1577 = vld [vmem:[%s14 + $0xd8] sm:$0xff]
        %v1578 = vld [vmem:[%s14 + $0xe0] sm:$0xff]
        %v1579 = vld [vmem:[%s14 + $0xe8] sm:$0xff]
        %v1580 = vld [vmem:[%s14 + $0xf0] sm:$0xff]
        %v1581 = vld [vmem:[%s14 + $0xf8] sm:$0xff]
        %1582 = vmatpush.msra.mxu0 %v1565
        %1583 = vmatpush.msra.mxu0 %v1564
        %1584 = vmatpush.msra.mxu0 %v1563
        %1585 = vmatpush.msra.mxu0 %v1562
        %1586 = vmatpush.msra.mxu0 %v1561
        %1587 = vmatpush.msra.mxu0 %v1560
        %1588 = vmatpush.msra.mxu0 %v1559
        %1589 = vmatpush.msra.mxu0 %v1558
        %1590 = vmatpush.msra.mxu0 %v1557
        %1591 = vmatpush.msra.mxu0 %v1556
        %1592 = vmatpush.msra.mxu0 %v1555
        %1593 = vmatpush.msra.mxu0 %v1554
        %1594 = vmatpush.msra.mxu0 %v1553
        %1595 = vmatpush.msra.mxu0 %v1552
        %1596 = vmatpush.msra.mxu0 %v1551
        %1597 = vmatpush.msra.mxu0 %v1550
        %1598 = vmatmul.f32.gmra.mxu0 %v1518
        %v1599 = vpop.f32.mrf.mxu0
        %v1600 = vadd.f32 %v1057, %v1599
        %1601 = vmatmul.f32.gmra.mxu0 %v1520
        %v1602 = vpop.f32.mrf.mxu0
        %v1603 = vadd.f32 %v1060, %v1602
        %1604 = vmatmul.f32.gmra.mxu0 %v1522
        %v1605 = vpop.f32.mrf.mxu0
        %v1606 = vadd.f32 %v1063, %v1605
        %1607 = vmatmul.f32.gmra.mxu0 %v1524
        %v1608 = vpop.f32.mrf.mxu0
        %v1609 = vadd.f32 %v1066, %v1608
        %1610 = vmatmul.f32.gmra.mxu0 %v1526
        %v1611 = vpop.f32.mrf.mxu0
        %v1612 = vadd.f32 %v1069, %v1611
        %1613 = vmatmul.f32.gmra.mxu0 %v1528
        %v1614 = vpop.f32.mrf.mxu0
        %v1615 = vadd.f32 %v1072, %v1614
        %1616 = vmatmul.f32.gmra.mxu0 %v1530
        %v1617 = vpop.f32.mrf.mxu0
        %v1618 = vadd.f32 %v1075, %v1617
        %1619 = vmatmul.f32.gmra.mxu0 %v1532
        %v1620 = vpop.f32.mrf.mxu0
        %v1621 = vadd.f32 %v1078, %v1620
        %1622 = vmatmul.f32.gmra.mxu0 %v1534
        %v1623 = vpop.f32.mrf.mxu0
        %v1624 = vadd.f32 %v1081, %v1623
        %1625 = vmatmul.f32.gmra.mxu0 %v1536
        %v1626 = vpop.f32.mrf.mxu0
        %v1627 = vadd.f32 %v1084, %v1626
        %1628 = vmatmul.f32.gmra.mxu0 %v1538
        %v1629 = vpop.f32.mrf.mxu0
        %v1630 = vadd.f32 %v1087, %v1629
        %1631 = vmatmul.f32.gmra.mxu0 %v1540
        %v1632 = vpop.f32.mrf.mxu0
        %v1633 = vadd.f32 %v1090, %v1632
        %1634 = vmatmul.f32.gmra.mxu0 %v1542
        %v1635 = vpop.f32.mrf.mxu0
        %v1636 = vadd.f32 %v1093, %v1635
        %1637 = vmatmul.f32.gmra.mxu0 %v1544
        %v1638 = vpop.f32.mrf.mxu0
        %v1639 = vadd.f32 %v1096, %v1638
        %1640 = vmatmul.f32.gmra.mxu0 %v1546
        %v1641 = vpop.f32.mrf.mxu0
        %v1642 = vadd.f32 %v1099, %v1641
        %1643 = vmatmul.f32.gmra.mxu0 %v1548
        %v1644 = vpop.f32.mrf.mxu0
        %v1645 = vadd.f32 %v1102, %v1644
        %1646 = vdwg.mxu0
        %1647 = vmatpush.msra.mxu0 %v1581
        %1648 = vmatpush.msra.mxu0 %v1580
        %1649 = vmatpush.msra.mxu0 %v1579
        %1650 = vmatpush.msra.mxu0 %v1578
        %1651 = vmatpush.msra.mxu0 %v1577
        %1652 = vmatpush.msra.mxu0 %v1576
        %1653 = vmatpush.msra.mxu0 %v1575
        %1654 = vmatpush.msra.mxu0 %v1574
        %1655 = vmatpush.msra.mxu0 %v1573
        %1656 = vmatpush.msra.mxu0 %v1572
        %1657 = vmatpush.msra.mxu0 %v1571
        %1658 = vmatpush.msra.mxu0 %v1570
        %1659 = vmatpush.msra.mxu0 %v1569
        %1660 = vmatpush.msra.mxu0 %v1568
        %1661 = vmatpush.msra.mxu0 %v1567
        %1662 = vmatpush.msra.mxu0 %v1566
        %1663 = vmatmul.f32.gmra.mxu0 %v1519
        %v1664 = vpop.f32.mrf.mxu0
        %v1665 = vadd.f32 %v1600, %v1664
        %1666 = vmatmul.f32.gmra.mxu0 %v1521
        %v1667 = vpop.f32.mrf.mxu0
        %v1668 = vadd.f32 %v1603, %v1667
        %1669 = vmatmul.f32.gmra.mxu0 %v1523
        %v1670 = vpop.f32.mrf.mxu0
        %v1671 = vadd.f32 %v1606, %v1670
        %1672 = vmatmul.f32.gmra.mxu0 %v1525
        %v1673 = vpop.f32.mrf.mxu0
        %v1674 = vadd.f32 %v1609, %v1673
        %1675 = vmatmul.f32.gmra.mxu0 %v1527
        %v1676 = vpop.f32.mrf.mxu0
        %v1677 = vadd.f32 %v1612, %v1676
        %1678 = vmatmul.f32.gmra.mxu0 %v1529
        %v1679 = vpop.f32.mrf.mxu0
        %v1680 = vadd.f32 %v1615, %v1679
        %1681 = vmatmul.f32.gmra.mxu0 %v1531
        %v1682 = vpop.f32.mrf.mxu0
        %v1683 = vadd.f32 %v1618, %v1682
        %1684 = vmatmul.f32.gmra.mxu0 %v1533
        %v1685 = vpop.f32.mrf.mxu0
        %v1686 = vadd.f32 %v1621, %v1685
        %1687 = vmatmul.f32.gmra.mxu0 %v1535
        %v1688 = vpop.f32.mrf.mxu0
        %v1689 = vadd.f32 %v1624, %v1688
        %1690 = vmatmul.f32.gmra.mxu0 %v1537
        %v1691 = vpop.f32.mrf.mxu0
        %v1692 = vadd.f32 %v1627, %v1691
        %1693 = vmatmul.f32.gmra.mxu0 %v1539
        %v1694 = vpop.f32.mrf.mxu0
        %v1695 = vadd.f32 %v1630, %v1694
        %1696 = vmatmul.f32.gmra.mxu0 %v1541
        %v1697 = vpop.f32.mrf.mxu0
        %v1698 = vadd.f32 %v1633, %v1697
        %1699 = vmatmul.f32.gmra.mxu0 %v1543
        %v1700 = vpop.f32.mrf.mxu0
        %v1701 = vadd.f32 %v1636, %v1700
        %1702 = vmatmul.f32.gmra.mxu0 %v1545
        %v1703 = vpop.f32.mrf.mxu0
        %v1704 = vadd.f32 %v1639, %v1703
        %1705 = vmatmul.f32.gmra.mxu0 %v1547
        %v1706 = vpop.f32.mrf.mxu0
        %v1707 = vadd.f32 %v1642, %v1706
        %1708 = vmatmul.f32.gmra.mxu0 %v1549
        %v1709 = vpop.f32.mrf.mxu0
        %v1710 = vadd.f32 %v1645, %v1709
        %1711 = vdwg.mxu0
        %v1712 = vlaneseq
        %v1713 = vshrl.u32 %v1712, 7
        %v1714 = vadd.s32 %v1713, 8
        %v1715 = vadd.s32 %v1713, 16
        %v1716 = vld [vmem:[%s613] sm:$0x1]
        %v1717 = vperm.slane %v1716, 0
        %vm1718 = vcmp.eq.s32.totalorder %v1713, %v1717
        %vm1719 = vcmp.eq.s32.totalorder %v1714, %v1717
        %vm1720 = vcmp.eq.s32.totalorder %v1715, %v1717
        %v1721 = vld [vmem:[%s604] sm:$0x1]
        %v1723 = vperm.slane %v1721, 0
        %v1725 = vsel %vm1718, %v1723, 0.0
        %v1726 = vsel %vm1719, %v1723, 0.0
        %v1727 = vsel %vm1720, %v1723, 0.0
        %v1728 = vld [vmem:[#allocation3] sm:$0xff]
        %v1729 = vld [vmem:[#allocation3 + $0x8] sm:$0xff]
        %v1730 = vld [vmem:[#allocation3 + $0x10] sm:$0xff]
        %1731 = vmatpush.msra.mxu0 %v1710
        %1732 = vmatpush.msra.mxu0 %v1707
        %1733 = vmatpush.msra.mxu0 %v1704
        %1734 = vmatpush.msra.mxu0 %v1701
        %1735 = vmatpush.msra.mxu0 %v1698
        %1736 = vmatpush.msra.mxu0 %v1695
        %1737 = vmatpush.msra.mxu0 %v1692
        %1738 = vmatpush.msra.mxu0 %v1689
        %1739 = vmatpush.msra.mxu0 %v1686
        %1740 = vmatpush.msra.mxu0 %v1683
        %1741 = vmatpush.msra.mxu0 %v1680
        %1742 = vmatpush.msra.mxu0 %v1677
        %1743 = vmatpush.msra.mxu0 %v1674
        %1744 = vmatpush.msra.mxu0 %v1671
        %1745 = vmatpush.msra.mxu0 %v1668
        %1746 = vmatpush.msra.mxu0 %v1665
        %1747 = vmatmul.f32.gmra.mxu0 %v1725
        %v1748 = vpop.f32.mrf.mxu0
        %v1749 = vadd.f32 0.0, %v1748
        %1750 = vmatmul.f32.gmra.mxu0 %v1726
        %v1751 = vpop.f32.mrf.mxu0
        %v1752 = vadd.f32 0.0, %v1751
        %1753 = vmatmul.f32.gmra.mxu0 %v1727
        %v1754 = vpop.f32.mrf.mxu0
        %v1755 = vadd.f32 0.0, %v1754
        %1756 = vdwg.mxu0
        %v1757 = vadd.f32 %v1728, %v1749
        %v1758 = vadd.f32 %v1729, %v1752
        %v1759 = vadd.f32 %v1730, %v1755
        %1760 = vst.msk [vmem:[#allocation3] sm:$0xff] %vm1339, %v1757
        %1761 = vst.msk [vmem:[#allocation3 + $0x8] sm:$0xff] %vm1339, %v1758
        %1762 = vst.msk [vmem:[#allocation3 + $0x10] sm:$0xff] %vm1339, %v1759
        %p1763 = scmp.eq.s32.totalorder %s30, 2
        // Predicated region
        $region97: #{tpu_custom_call.1} parent=91 // pred_check
          %p1764 = pneg %p1763
        $region98: #{tpu_custom_call.1} parent=91 // pred_check_branch
          %1766 = sbr.rel (%p1764) target = $region100
        $region99: #{tpu_custom_call.1} parent=91 // pred_region
          %v1767 = vld [vmem:[#allocation3] sm:$0xff]
          %v1768 = vld [vmem:[#allocation3 + $0x8] sm:$0xff]
          %v1769 = vld [vmem:[#allocation3 + $0x10] sm:$0xff]
          %v1770 = vld [vmem:[%s15] sm:$0x1]
          %v1772 = vperm.slane %v1770, 0
          %v1774 = vadd.f32 %v1767, %v1772
          %v1775 = vadd.f32 %v1768, %v1772
          %v1776 = vadd.f32 %v1769, %v1772
          %v1777 = vmax.f32 %v1774, 0.0
          %v1778 = vmax.f32 %v1775, 0.0
          %v1779 = vmax.f32 %v1776, 0.0
          %v1780 = vld [vmem:[%s16] sm:$0xff]
          %v1781 = vld [vmem:[%s16 + $0x8] sm:$0xff]
          %v1782 = vld [vmem:[%s17] sm:$0x1]
          %v1784 = vperm.slane %v1782, 0
          %v1787 = vsel %vm1339, %v1777, 0
          %v1790 = vsel %vm1339, %v1778, 0
          %v1793 = vsel %vm1339, %v1779, 0
          %1795 = vmatpush.msra.mxu0 0.0
          %1796 = vmatpush.msra.mxu0 0.0
          %1797 = vmatpush.msra.mxu0 0.0
          %1798 = vmatpush.msra.mxu0 0.0
          %1799 = vmatpush.msra.mxu0 0.0
          %1800 = vmatpush.msra.mxu0 0.0
          %1801 = vmatpush.msra.mxu0 0.0
          %1802 = vmatpush.msra.mxu0 0.0
          %1803 = vmatpush.msra.mxu0 0.0
          %1804 = vmatpush.msra.mxu0 0.0
          %1805 = vmatpush.msra.mxu0 0.0
          %1806 = vmatpush.msra.mxu0 0.0
          %1807 = vmatpush.msra.mxu0 0.0
          %1808 = vmatpush.msra.mxu0 0.0
          %1809 = vmatpush.msra.mxu0 %v1781
          %1810 = vmatpush.msra.mxu0 %v1780
          %1811 = vmatmul.f32.gmra.mxu0 %v1787
          %v1812 = vpop.f32.mrf.mxu0
          %v1813 = vadd.f32 %v1784, %v1812
          %1814 = vmatmul.f32.gmra.mxu0 %v1790
          %v1815 = vpop.f32.mrf.mxu0
          %v1816 = vadd.f32 %v1784, %v1815
          %1817 = vmatmul.f32.gmra.mxu0 %v1793
          %v1818 = vpop.f32.mrf.mxu0
          %v1819 = vadd.f32 %v1784, %v1818
          %1820 = vdwg.mxu0
          %1821 = vst [vmem:[#allocation4] sm:$0xff] %v1813
          %1822 = vst [vmem:[#allocation4 + $0x8] sm:$0xff] %v1816
          %1823 = vst [vmem:[#allocation4 + $0x10] sm:$0xff] %v1819
        $region100: #{tpu_custom_call.1} parent=91 // pred_fallthru
          _
        // Predicated region
        $region101: #{tpu_custom_call.1} parent=91 // pred_check
          %p1824 = pneg %p441
        $region102: #{tpu_custom_call.1} parent=91 // pred_check_branch
          %1826 = sbr.rel (%p1824) target = $region104
        $region103: #{tpu_custom_call.1} parent=91 // pred_region
          %1828 = vsyncadd [#allocation5], 0
          %s1829 = sshll.u32 [#allocation4], 4
          %s1830 = int_to_ptr.vmem [resolvable:$true] %s1829
          %s1831 = sshll.u32 %s18, 4
          %s1832 = int_to_ptr.hbm [resolvable:$true] %s1831
          %1837 = dma.vmem_to_hbm [thread:$0]  %s1830, 384, %s1832, [#allocation5], 128, 128, 8
        $region104: #{tpu_custom_call.1} parent=91 // pred_fallthru
          _
        // Predicated region
        $region105: #{tpu_custom_call.1} parent=91 // pred_check
          %p1838 = pneg %p441
        $region106: #{tpu_custom_call.1} parent=91 // pred_check_branch
          %1840 = sbr.rel (%p1838) target = $region108
        $region107: #{tpu_custom_call.1} parent=91 // pred_region
          %1842 = dma.done [#allocation5], 384
        $region108: #{tpu_custom_call.1} parent=91 // pred_fallthru
          _
      $region92: #{tpu_custom_call.1} parent=5 // pred_fallthru
        _
      %p1843 = scmp.le.s32.totalorder 2, %s25
      // Predicated region
      $region109: #{tpu_custom_call.1} parent=5 // pred_check
        %p1844 = pneg %p1843
      $region110: #{tpu_custom_call.1} parent=5 // pred_check_branch
        %1846 = sbr.rel (%p1844) target = $region112
      $region111: #{tpu_custom_call.1} parent=5 // pred_region
        %s1847 = ssub.s32 %s25, 2
      $region112: #{tpu_custom_call.1} parent=5 // pred_fallthru
        _
    $region6: #{tpu_custom_call.1} parent=1 // loop_footer
      %s29 = sadd.s32 1, %s25
    $region7: #{tpu_custom_call.1} parent=1 // loop_footer_branch
      %24 = sbr.rel target = $region3
    $region8: #{tpu_custom_call.1} parent=1 // loop_exit
      _
    %1848 = vsyncpa [#allocation5], 1
    %s1849 = scalar_lea.sflag [#allocation5], 1
    %1850 = vsyncpa %s1849, 1

</llo_original>
